<compile_context>
chip_gen: v6e
topology: v6e:2x2x1
jax: 0.10.0
libtpu: 0.0.40
codegen_flags: <defaults>
</compile_context>

<pallas_src>
import functools

import jax
import jax.numpy as jnp
import numpy as np
from jax.experimental import pallas as pl
from jax.experimental.pallas import tpu as pltpu

F32_MAX = float(jnp.finfo(jnp.float32).max)   # torch.nan_to_num posinf default
F32_MIN = float(jnp.finfo(jnp.float32).min)   # torch.nan_to_num neginf default


def _round_up(x, m):
    return ((x + m - 1) // m) * m


def _cdiv(a, b):
    return -(-a // b)


def _indicator(x):
    """NaN -> -1, +inf -> 1, -inf -> 2, finite -> 0 (float32)."""
    is_nan = jnp.isnan(x)
    is_pinf = x == jnp.inf
    is_ninf = x == -jnp.inf
    ind = (is_pinf.astype(jnp.float32)
           + 2.0 * is_ninf.astype(jnp.float32)
           - is_nan.astype(jnp.float32))
    return ind, is_nan


# --------------------------------------------------------------------------
# Pass 1: seq-axis statistics of the NaN/inf indicator (lane-dense 2D view).
# --------------------------------------------------------------------------
def _stats_kernel(x_ref, mean_ref, inv_std_ref, sum_ref, sq_ref, *, seq_len):
    i = pl.program_id(1)                              # seq-tile step

    @pl.when(i == 0)
    def _():
        sum_ref[...] = jnp.zeros_like(sum_ref)
        sq_ref[...] = jnp.zeros_like(sq_ref)

    ind, _ = _indicator(x_ref[...])                   # (ts_stats, chunk)
    sum_ref[...] += jnp.sum(ind, axis=0, keepdims=True)
    sq_ref[...] += jnp.sum(ind * ind, axis=0, keepdims=True)

    @pl.when(i == pl.num_programs(1) - 1)
    def _():
        n = jnp.float32(seq_len)                      # true S (padding is 0)
        mean = sum_ref[...] / n
        # sample variance (ddof=1), streaming form; clamp tiny negatives.
        var = jnp.maximum((sq_ref[...] - sum_ref[...] * mean) / (n - 1.0), 0.0)
        mean_ref[...] = mean
        inv_std_ref[...] = 1.0 / (jnp.sqrt(var) + 1e-6)


# --------------------------------------------------------------------------
# Pass 2: fused nan_to_num / indicator-normalize / Linear.
# --------------------------------------------------------------------------
def _encode_kernel(x_ref, mean_ref, inv_std_ref, w_num_ref, w_ind_ref, b_ref,
                   o_ref):
    x = x_ref[...]                                    # (ts, B_pad, F)
    ts, B, F = x.shape

    ind, is_nan = _indicator(x)
    # torch.nan_to_num(x, nan=0.0): clip folds +/-inf to F32_MAX / F32_MIN.
    x_clean = jnp.where(is_nan, 0.0, jnp.clip(x, F32_MIN, F32_MAX))
    norm = jnp.clip((ind - mean_ref[...][None]) * inv_std_ref[...][None],
                    -100.0, 100.0)

    # (ts, B, F) -> (ts*B, F): layout no-op since B_pad % 8 == 0 (f32 sublanes).
    feat_num = x_clean.reshape(ts * B, F)
    feat_ind = norm.reshape(ts * B, F)

    # concat([x_clean, norm], -1) @ [w_num; w_ind] + b, as two MXU matmuls.
    acc = jnp.dot(feat_num, w_num_ref[...], preferred_element_type=jnp.float32)
    acc += jnp.dot(feat_ind, w_ind_ref[...], preferred_element_type=jnp.float32)
    o_ref[...] = acc + b_ref[...]                     # (ts*B, E), lane-dense


# --------------------------------------------------------------------------
# Sizing helpers (padding- and generation-aware).
# --------------------------------------------------------------------------
def _vmem_capacity_bytes():
    """Physical VMEM per core; conservative 64 MiB fallback (safe on v7x)."""
    try:
        info = pltpu.get_tpu_info()
        cap = int(getattr(info, "vmem_capacity_bytes", 0) or 0)
        if cap > 0:
            return cap
    except Exception:
        pass
    return 64 * 2 ** 20


def _pick_encode_tile(S, B_pad, F, E, budget):
    """Seq tile for pass 2 fitting `budget`, >=2 (even) grid steps when possible."""
    F_lanes = _round_up(F, 128)
    E_lanes = _round_up(E, 128)
    # Padding-aware per-seq-row cost: double-buffered x & out blocks plus
    # f32 temporaries (ind, x_clean, norm, reshaped feats) and the accumulator.
    per_row = (6 * B_pad * F_lanes + 3 * B_pad * E_lanes) * 4
    resid = (2 * B_pad * F_lanes * 4 * 2              # mean, inv_std (x2 buf)
             + 2 * _round_up(F, 8) * E_lanes * 4 * 2  # w_num, w_ind  (x2 buf)
             + 8 * E_lanes * 4 * 2)                   # bias          (x2 buf)
    ts_max = max(8, ((budget - resid) // per_row) // 8 * 8)
    ts_max = min(ts_max, _round_up(S, 8))

    n = max(1, _cdiv(S, ts_max))
    if n == 1 and S > 8:
        n = 2                     # >=2 steps so both v7x TensorCores get work
    if n > 1 and n % 2 == 1:
        n += 1                    # even split across the two v7x cores
    ts = _round_up(_cdiv(S, n), 8)
    S_pad = ts * _cdiv(S, ts)
    return ts, S_pad // ts, S_pad


def _pick_stats_tile(ts_enc, n_enc, chunk_lanes, budget):
    """Largest stats tile = d*ts_enc (d | n_enc) fitting the pass-1 budget."""
    per_row = 4 * chunk_lanes * 4     # double-buffered x block + indicator temps
    best = 1
    for d in range(1, n_enc + 1):
        if n_enc % d == 0 and d * ts_enc * per_row <= budget:
            best = d
    return best * ts_enc, n_enc // best


# --------------------------------------------------------------------------
# Wrapper.
# --------------------------------------------------------------------------
@jax.jit
def nan_handling_encoder(x, w, b):
    """x: (S, B, F) f32; w: (2F, E) f32 (in_features x emsize, i.e. W.T);
    b: (E,) or (1, E) f32.  Returns (S, B, E) f32 (keep_nans=True path)."""
    S, B, F = x.shape
    E = w.shape[1]
    assert w.shape[0] == 2 * F, (w.shape, F)
    x = x.astype(jnp.float32)
    w = w.astype(jnp.float32)
    b = b.reshape(1, E).astype(jnp.float32)

    cap = max(_vmem_capacity_bytes(), 64 * 2 ** 20)
    budget = int(min((3 * cap) // 4, cap - 16 * 2 ** 20))  # 48 MiB on v7x, 96 on v5e/v6e

    B_pad = _round_up(B, 8)
    ts_enc, n_enc, S_pad = _pick_encode_tile(S, B_pad, F, E, budget)

    # Pad seq/batch with finite zeros: indicator(0) == 0, so pass-1 sums are
    # unaffected (we divide by the true S) and padded output rows are sliced off.
    if (S_pad, B_pad) != (S, B):
        x = jnp.pad(x, ((0, S_pad - S), (0, B_pad - B), (0, 0)))

    # ---- Pass 1: lane-dense statistics over the seq axis -------------------
    BF = B_pad * F
    n_col = 2 if (BF % 256 == 0) else 1     # split the column plane across v7x TCs
    chunk = BF // n_col
    chunk_lanes = _round_up(chunk, 128)
    ts_st, n_st = _pick_stats_tile(ts_enc, n_enc, chunk_lanes, budget)
    x2d = x.reshape(S_pad, BF)              # free row-major collapse

    mean2d, inv_std2d = pl.pallas_call(
        functools.partial(_stats_kernel, seq_len=S),
        out_shape=(jax.ShapeDtypeStruct((1, BF), jnp.float32),
                   jax.ShapeDtypeStruct((1, BF), jnp.float32)),
        grid=(n_col, n_st),
        in_specs=[pl.BlockSpec((ts_st, chunk), lambda c, i: (i, c))],
        out_specs=[pl.BlockSpec((1, chunk), lambda c, i: (0, c)),
                   pl.BlockSpec((1, chunk), lambda c, i: (0, c))],
        scratch_shapes=[pltpu.VMEM((1, chunk), jnp.float32),
                        pltpu.VMEM((1, chunk), jnp.float32)],
        compiler_params=pltpu.CompilerParams(
            dimension_semantics=("parallel", "arbitrary"),
            vmem_limit_bytes=budget),
    )(x2d)

    mean = mean2d.reshape(B_pad, F)
    inv_std = inv_std2d.reshape(B_pad, F)

    w_num = w[:F]     # weights applied to nan_to_num(x)
    w_ind = w[F:]     # weights applied to the normalized nan-indicator

    # ---- Pass 2: row-tiled fused nan_to_num / normalize / Linear -----------
    out2d = pl.pallas_call(
        _encode_kernel,
        out_shape=jax.ShapeDtypeStruct((S_pad * B_pad, E), jnp.float32),
        grid=(n_enc,),
        in_specs=[
            pl.BlockSpec((ts_enc, B_pad, F), lambda i: (i, 0, 0)),  # x tile
            pl.BlockSpec((B_pad, F), lambda i: (0, 0)),             # mean
            pl.BlockSpec((B_pad, F), lambda i: (0, 0)),             # inv_std
            pl.BlockSpec((F, E), lambda i: (0, 0)),                 # w_num
            pl.BlockSpec((F, E), lambda i: (0, 0)),                 # w_ind
            pl.BlockSpec((1, E), lambda i: (0, 0)),                 # bias
        ],
        out_specs=pl.BlockSpec((ts_enc * B_pad, E), lambda i: (i, 0)),
        compiler_params=pltpu.CompilerParams(
            dimension_semantics=("parallel",),
            vmem_limit_bytes=budget),
    )(x, mean, inv_std, w_num, w_ind, b)

    out = out2d.reshape(S_pad, B_pad, E)
    return out[:S, :B]


# --------------------------------------------------------------------------
# Pure-JAX reference matching the PyTorch forward (keep_nans=True).
# --------------------------------------------------------------------------
def reference(x, w, b):
    is_nan = jnp.isnan(x)
    is_pinf = x == jnp.inf
    is_ninf = x == -jnp.inf
    x_clean = jnp.where(
        is_nan, 0.0, jnp.where(is_pinf, F32_MAX, jnp.where(is_ninf, F32_MIN, x)))
    ind = (jnp.where(is_nan, -1.0, 0.0) + jnp.where(is_pinf, 1.0, 0.0)
           + jnp.where(is_ninf, 2.0, 0.0))
    mean = jnp.mean(ind, axis=0, keepdims=True)
    var = jnp.sum((ind - mean) ** 2, axis=0, keepdims=True) / (x.shape[0] - 1)
    std = jnp.sqrt(var)
    norm = jnp.clip((ind - mean) / (std + 1e-6), -100.0, 100.0)
    feat = jnp.concatenate([x_clean, norm], axis=-1)
    return feat @ w + b.reshape(1, -1)


if __name__ == "__main__":
    def run_case(S, B, F, E, key):
        kx, kw, kb = jax.random.split(key, 3)
        x = jax.random.normal(kx, (S, B, F), dtype=jnp.float32)
        # Inject NaN / +inf / -inf so the nan-handling paths are exercised.
        x = x.at[0, 0, 0].set(jnp.nan)
        x = x.at[1 % S, 0, 1 % F].set(jnp.inf)
        x = x.at[2 % S, min(1, B - 1), 2 % F].set(-jnp.inf)
        x = x.at[S - 1, B - 1, F - 1].set(jnp.nan)
        x = x.at[S // 2, B // 2, F // 2].set(jnp.nan)

        in_features = 2 * F
        bound = 1.0 / (in_features ** 0.5)
        w = jax.random.uniform(kw, (in_features, E), jnp.float32, -bound, bound)
        b = jax.random.uniform(kb, (1, E), jnp.float32, -bound, bound)

        out = jax.block_until_ready(nan_handling_encoder(x, w, b))
        ref = reference(x, w, b)
        assert out.shape == (S, B, E), out.shape
        np.testing.assert_allclose(np.asarray(out), np.asarray(ref),
                                   rtol=1e-5, atol=1e-5)

    key = jax.random.PRNGKey(0)
    k1, k2 = jax.random.split(key)
    # Aligned shapes (2 encode tiles, single big stats tile).
    run_case(64, 8, 16, 128, k1)
    # Awkward seq/batch (prime-ish S, B not a multiple of 8) -> padding path.
    run_case(37, 3, 10, 128, k2)

    print("KERNEL_OK")
</pallas_src>

<mosaic_0001>
module attributes {stable_mosaic.version = 11 : i64} {
  func.func @_stats_kernel(%arg0: i32, %arg1: i32, %arg2: memref<64x128xf32, #tpu.memory_space<vmem>>, %arg3: memref<1x128xf32, #tpu.memory_space<vmem>>, %arg4: memref<1x128xf32, #tpu.memory_space<vmem>>, %arg5: memref<1x128xf32, #tpu.memory_space<vmem>>, %arg6: memref<1x128xf32, #tpu.memory_space<vmem>>) attributes {dimension_semantics = [#tpu.dimension_semantics<parallel>, #tpu.dimension_semantics<arbitrary>], iteration_bounds = array<i64: 1, 1>, scalar_prefetch = 0 : i64, scratch_operands = 2 : i64, tpu.core_type = #tpu.core_type<tc>, window_params = [{transform_indices = @transform_0, window_bounds = array<i64: 64, 128>}, {transform_indices = @transform_1, window_bounds = array<i64: 1, 128>}, {transform_indices = @transform_2, window_bounds = array<i64: 1, 128>}]} {
    %c0_i32 = arith.constant 0 : i32
    %0 = arith.cmpi eq, %arg1, %c0_i32 : i32
    %1 = arith.extui %0 : i1 to i32
    %c0_i32_0 = arith.constant 0 : i32
    %2 = arith.cmpi ne, %1, %c0_i32_0 : i32
    scf.if %2 {
      %cst_16 = arith.constant 0.000000e+00 : f32
      %33 = vector.broadcast %cst_16 : f32 to vector<1x128xf32>
      %c0_17 = arith.constant 0 : index
      %c0_18 = arith.constant 0 : index
      %34 = vector.load %arg5[%c0_17, %c0_18] : memref<1x128xf32, #tpu.memory_space<vmem>>, vector<1x128xf32>
      tpu.vector_store %arg5[%c0_17, %c0_18], %33 {strides = array<i32>} : memref<1x128xf32, #tpu.memory_space<vmem>>, vector<1x128xf32>,
      %cst_19 = arith.constant 0.000000e+00 : f32
      %35 = vector.broadcast %cst_19 : f32 to vector<1x128xf32>
      %c0_20 = arith.constant 0 : index
      %c0_21 = arith.constant 0 : index
      %36 = vector.load %arg6[%c0_20, %c0_21] : memref<1x128xf32, #tpu.memory_space<vmem>>, vector<1x128xf32>
      tpu.vector_store %arg6[%c0_20, %c0_21], %35 {strides = array<i32>} : memref<1x128xf32, #tpu.memory_space<vmem>>, vector<1x128xf32>,
    } else {
    }
    %c0 = arith.constant 0 : index
    %c0_1 = arith.constant 0 : index
    %3 = vector.load %arg2[%c0, %c0_1] : memref<64x128xf32, #tpu.memory_space<vmem>>, vector<64x128xf32>
    %4 = arith.cmpf one, %3, %3 : vector<64x128xf32>
    %cst = arith.constant 0x7F800000 : f32
    %5 = vector.broadcast %cst : f32 to vector<64x128xf32>
    %6 = arith.cmpf oeq, %3, %5 : vector<64x128xf32>
    %cst_2 = arith.constant 0xFF800000 : f32
    %7 = vector.broadcast %cst_2 : f32 to vector<64x128xf32>
    %8 = arith.cmpf oeq, %3, %7 : vector<64x128xf32>
    %9 = arith.extui %6 : vector<64x128xi1> to vector<64x128xi32>
    %10 = arith.sitofp %9 : vector<64x128xi32> to vector<64x128xf32>
    %11 = arith.extui %8 : vector<64x128xi1> to vector<64x128xi32>
    %12 = arith.sitofp %11 : vector<64x128xi32> to vector<64x128xf32>
    %cst_3 = arith.constant 2.000000e+00 : f32
    %13 = vector.broadcast %cst_3 : f32 to vector<64x128xf32>
    %14 = arith.mulf %13, %12 : vector<64x128xf32>
    %15 = arith.addf %10, %14 : vector<64x128xf32>
    %16 = arith.extui %4 : vector<64x128xi1> to vector<64x128xi32>
    %17 = arith.sitofp %16 : vector<64x128xi32> to vector<64x128xf32>
    %18 = arith.subf %15, %17 : vector<64x128xf32>
    %c0_4 = arith.constant 0 : index
    %c0_5 = arith.constant 0 : index
    %19 = vector.load %arg5[%c0_4, %c0_5] : memref<1x128xf32, #tpu.memory_space<vmem>>, vector<1x128xf32>
    %cst_6 = arith.constant dense<0.000000e+00> : vector<128xf32>
    %20 = vector.multi_reduction <add>, %18, %cst_6 [0] : vector<64x128xf32> to vector<128xf32>
    %21 = vector.shape_cast %20 : vector<128xf32> to vector<1x128xf32>
    %22 = arith.addf %19, %21 : vector<1x128xf32>
    %c0_7 = arith.constant 0 : index
    %c0_8 = arith.constant 0 : index
    %23 = vector.load %arg5[%c0_7, %c0_8] : memref<1x128xf32, #tpu.memory_space<vmem>>, vector<1x128xf32>
    tpu.vector_store %arg5[%c0_7, %c0_8], %22 {strides = array<i32>} : memref<1x128xf32, #tpu.memory_space<vmem>>, vector<1x128xf32>,
    %c0_9 = arith.constant 0 : index
    %c0_10 = arith.constant 0 : index
    %24 = vector.load %arg6[%c0_9, %c0_10] : memref<1x128xf32, #tpu.memory_space<vmem>>, vector<1x128xf32>
    %25 = arith.mulf %18, %18 : vector<64x128xf32>
    %cst_11 = arith.constant dense<0.000000e+00> : vector<128xf32>
    %26 = vector.multi_reduction <add>, %25, %cst_11 [0] : vector<64x128xf32> to vector<128xf32>
    %27 = vector.shape_cast %26 : vector<128xf32> to vector<1x128xf32>
    %28 = arith.addf %24, %27 : vector<1x128xf32>
    %c0_12 = arith.constant 0 : index
    %c0_13 = arith.constant 0 : index
    %29 = vector.load %arg6[%c0_12, %c0_13] : memref<1x128xf32, #tpu.memory_space<vmem>>, vector<1x128xf32>
    tpu.vector_store %arg6[%c0_12, %c0_13], %28 {strides = array<i32>} : memref<1x128xf32, #tpu.memory_space<vmem>>, vector<1x128xf32>,
    %c0_i32_14 = arith.constant 0 : i32
    %30 = arith.cmpi eq, %arg1, %c0_i32_14 : i32
    %31 = arith.extui %30 : i1 to i32
    %c0_i32_15 = arith.constant 0 : i32
    %32 = arith.cmpi ne, %31, %c0_i32_15 : i32
    scf.if %32 {
      %c0_16 = arith.constant 0 : index
      %c0_17 = arith.constant 0 : index
      %33 = vector.load %arg5[%c0_16, %c0_17] : memref<1x128xf32, #tpu.memory_space<vmem>>, vector<1x128xf32>
      %cst_18 = arith.constant 6.400000e+01 : f32
      %34 = vector.broadcast %cst_18 : f32 to vector<1x128xf32>
      %35 = arith.divf %33, %34 : vector<1x128xf32>
      %c0_19 = arith.constant 0 : index
      %c0_20 = arith.constant 0 : index
      %36 = vector.load %arg6[%c0_19, %c0_20] : memref<1x128xf32, #tpu.memory_space<vmem>>, vector<1x128xf32>
      %c0_21 = arith.constant 0 : index
      %c0_22 = arith.constant 0 : index
      %37 = vector.load %arg5[%c0_21, %c0_22] : memref<1x128xf32, #tpu.memory_space<vmem>>, vector<1x128xf32>
      %38 = arith.mulf %37, %35 : vector<1x128xf32>
      %39 = arith.subf %36, %38 : vector<1x128xf32>
      %cst_23 = arith.constant 6.400000e+01 : f32
      %cst_24 = arith.constant 1.000000e+00 : f32
      %40 = arith.subf %cst_23, %cst_24 : f32
      %41 = vector.broadcast %40 : f32 to vector<1x128xf32>
      %42 = arith.divf %39, %41 : vector<1x128xf32>
      %cst_25 = arith.constant 0.000000e+00 : f32
      %43 = vector.broadcast %cst_25 : f32 to vector<1x128xf32>
      %44 = arith.maximumf %42, %43 : vector<1x128xf32>
      %c0_26 = arith.constant 0 : index
      %c0_27 = arith.constant 0 : index
      %45 = vector.load %arg3[%c0_26, %c0_27] : memref<1x128xf32, #tpu.memory_space<vmem>>, vector<1x128xf32>
      tpu.vector_store %arg3[%c0_26, %c0_27], %35 {strides = array<i32>} : memref<1x128xf32, #tpu.memory_space<vmem>>, vector<1x128xf32>,
      %46 = math.sqrt %44 : vector<1x128xf32>
      %cst_28 = arith.constant 9.99999997E-7 : f32
      %47 = vector.broadcast %cst_28 : f32 to vector<1x128xf32>
      %48 = arith.addf %46, %47 : vector<1x128xf32>
      %cst_29 = arith.constant 1.000000e+00 : f32
      %49 = vector.broadcast %cst_29 : f32 to vector<1x128xf32>
      %50 = arith.divf %49, %48 : vector<1x128xf32>
      %c0_30 = arith.constant 0 : index
      %c0_31 = arith.constant 0 : index
      %51 = vector.load %arg4[%c0_30, %c0_31] : memref<1x128xf32, #tpu.memory_space<vmem>>, vector<1x128xf32>
      tpu.vector_store %arg4[%c0_30, %c0_31], %50 {strides = array<i32>} : memref<1x128xf32, #tpu.memory_space<vmem>>, vector<1x128xf32>,
    } else {
    }
    return
  }
  func.func @transform_0(%arg0: i32, %arg1: i32) -> (i32, i32) {
    %c0_i32 = arith.constant 0 : i32
    return %arg1, %arg0 : i32, i32
  }
  func.func @transform_1(%arg0: i32, %arg1: i32) -> (i32, i32) {
    %c0_i32 = arith.constant 0 : i32
    %c0_i32_0 = arith.constant 0 : i32
    return %c0_i32, %arg0 : i32, i32
  }
  func.func @transform_2(%arg0: i32, %arg1: i32) -> (i32, i32) {
    %c0_i32 = arith.constant 0 : i32
    %c0_i32_0 = arith.constant 0 : i32
    return %c0_i32, %arg0 : i32, i32
  }
}

module attributes {stable_mosaic.version = 11 : i64} {
  func.func @_encode_kernel(%arg0: i32, %arg1: memref<32x8x16xf32, #tpu.memory_space<vmem>>, %arg2: memref<8x16xf32, #tpu.memory_space<vmem>>, %arg3: memref<8x16xf32, #tpu.memory_space<vmem>>, %arg4: memref<16x128xf32, #tpu.memory_space<vmem>>, %arg5: memref<16x128xf32, #tpu.memory_space<vmem>>, %arg6: memref<1x128xf32, #tpu.memory_space<vmem>>, %arg7: memref<256x128xf32, #tpu.memory_space<vmem>>) attributes {dimension_semantics = [#tpu.dimension_semantics<parallel>], iteration_bounds = array<i64: 2>, scalar_prefetch = 0 : i64, scratch_operands = 0 : i64, tpu.core_type = #tpu.core_type<tc>, window_params = [{transform_indices = @transform_0, window_bounds = array<i64: 32, 8, 16>}, {pipeline_mode = #tpu.pipeline_mode<synchronous>, transform_indices = @transform_1, window_bounds = array<i64: 8, 16>}, {pipeline_mode = #tpu.pipeline_mode<synchronous>, transform_indices = @transform_2, window_bounds = array<i64: 8, 16>}, {pipeline_mode = #tpu.pipeline_mode<synchronous>, transform_indices = @transform_3, window_bounds = array<i64: 16, 128>}, {pipeline_mode = #tpu.pipeline_mode<synchronous>, transform_indices = @transform_4, window_bounds = array<i64: 16, 128>}, {pipeline_mode = #tpu.pipeline_mode<synchronous>, transform_indices = @transform_5, window_bounds = array<i64: 1, 128>}, {transform_indices = @transform_6, window_bounds = array<i64: 256, 128>}]} {
    %c0 = arith.constant 0 : index
    %c0_0 = arith.constant 0 : index
    %c0_1 = arith.constant 0 : index
    %0 = vector.load %arg1[%c0, %c0_0, %c0_1] : memref<32x8x16xf32, #tpu.memory_space<vmem>>, vector<32x8x16xf32>
    %1 = arith.cmpf one, %0, %0 : vector<32x8x16xf32>
    %cst = arith.constant 0x7F800000 : f32
    %2 = vector.broadcast %cst : f32 to vector<32x8x16xf32>
    %3 = arith.cmpf oeq, %0, %2 : vector<32x8x16xf32>
    %cst_2 = arith.constant 0xFF800000 : f32
    %4 = vector.broadcast %cst_2 : f32 to vector<32x8x16xf32>
    %5 = arith.cmpf oeq, %0, %4 : vector<32x8x16xf32>
    %6 = arith.extui %3 : vector<32x8x16xi1> to vector<32x8x16xi32>
    %7 = arith.sitofp %6 : vector<32x8x16xi32> to vector<32x8x16xf32>
    %8 = arith.extui %5 : vector<32x8x16xi1> to vector<32x8x16xi32>
    %9 = arith.sitofp %8 : vector<32x8x16xi32> to vector<32x8x16xf32>
    %cst_3 = arith.constant 2.000000e+00 : f32
    %10 = vector.broadcast %cst_3 : f32 to vector<32x8x16xf32>
    %11 = arith.mulf %10, %9 : vector<32x8x16xf32>
    %12 = arith.addf %7, %11 : vector<32x8x16xf32>
    %13 = arith.extui %1 : vector<32x8x16xi1> to vector<32x8x16xi32>
    %14 = arith.sitofp %13 : vector<32x8x16xi32> to vector<32x8x16xf32>
    %15 = arith.subf %12, %14 : vector<32x8x16xf32>
    %cst_4 = arith.constant -3.40282347E+38 : f32
    %cst_5 = arith.constant 3.40282347E+38 : f32
    %16 = vector.broadcast %cst_4 : f32 to vector<32x8x16xf32>
    %17 = arith.maximumf %16, %0 : vector<32x8x16xf32>
    %18 = vector.broadcast %cst_5 : f32 to vector<32x8x16xf32>
    %19 = arith.minimumf %18, %17 : vector<32x8x16xf32>
    %cst_6 = arith.constant 0.000000e+00 : f32
    %20 = vector.broadcast %cst_6 : f32 to vector<32x8x16xf32>
    %21 = arith.select %1, %20, %19 : vector<32x8x16xi1>, vector<32x8x16xf32>
    %c0_7 = arith.constant 0 : index
    %c0_8 = arith.constant 0 : index
    %22 = vector.load %arg2[%c0_7, %c0_8] : memref<8x16xf32, #tpu.memory_space<vmem>>, vector<8x16xf32>
    %23 = vector.shape_cast %22 : vector<8x16xf32> to vector<1x8x16xf32>
    %24 = vector.broadcast %23 : vector<1x8x16xf32> to vector<32x8x16xf32>
    %25 = arith.subf %15, %24 : vector<32x8x16xf32>
    %c0_9 = arith.constant 0 : index
    %c0_10 = arith.constant 0 : index
    %26 = vector.load %arg3[%c0_9, %c0_10] : memref<8x16xf32, #tpu.memory_space<vmem>>, vector<8x16xf32>
    %27 = vector.shape_cast %26 : vector<8x16xf32> to vector<1x8x16xf32>
    %28 = vector.broadcast %27 : vector<1x8x16xf32> to vector<32x8x16xf32>
    %29 = arith.mulf %25, %28 : vector<32x8x16xf32>
    %cst_11 = arith.constant -1.000000e+02 : f32
    %cst_12 = arith.constant 1.000000e+02 : f32
    %30 = vector.broadcast %cst_11 : f32 to vector<32x8x16xf32>
    %31 = arith.maximumf %30, %29 : vector<32x8x16xf32>
    %32 = vector.broadcast %cst_12 : f32 to vector<32x8x16xf32>
    %33 = arith.minimumf %32, %31 : vector<32x8x16xf32>
    %34 = vector.shape_cast %21 : vector<32x8x16xf32> to vector<256x16xf32>
    %35 = vector.shape_cast %33 : vector<32x8x16xf32> to vector<256x16xf32>
    %c0_13 = arith.constant 0 : index
    %c0_14 = arith.constant 0 : index
    %36 = vector.load %arg4[%c0_13, %c0_14] : memref<16x128xf32, #tpu.memory_space<vmem>>, vector<16x128xf32>
    %cst_15 = arith.constant dense<0.000000e+00> : vector<256x128xf32>
    %37 = tpu.matmul %34, %36, %cst_15 {dimension_numbers = #tpu.dot_dimension_numbers<[1], [0], [0], [1], [0, 0, 1, 1], [], []>} : vector<256x16xf32>, vector<16x128xf32>, vector<256x128xf32> -> vector<256x128xf32>
    %c0_16 = arith.constant 0 : index
    %c0_17 = arith.constant 0 : index
    %38 = vector.load %arg5[%c0_16, %c0_17] : memref<16x128xf32, #tpu.memory_space<vmem>>, vector<16x128xf32>
    %cst_18 = arith.constant dense<0.000000e+00> : vector<256x128xf32>
    %39 = tpu.matmul %35, %38, %cst_18 {dimension_numbers = #tpu.dot_dimension_numbers<[1], [0], [0], [1], [0, 0, 1, 1], [], []>} : vector<256x16xf32>, vector<16x128xf32>, vector<256x128xf32> -> vector<256x128xf32>
    %40 = arith.addf %37, %39 : vector<256x128xf32>
    %c0_19 = arith.constant 0 : index
    %c0_20 = arith.constant 0 : index
    %41 = vector.load %arg6[%c0_19, %c0_20] : memref<1x128xf32, #tpu.memory_space<vmem>>, vector<1x128xf32>
    %42 = vector.broadcast %41 : vector<1x128xf32> to vector<256x128xf32>
    %43 = arith.addf %40, %42 : vector<256x128xf32>
    %c0_21 = arith.constant 0 : index
    %c0_22 = arith.constant 0 : index
    %44 = vector.load %arg7[%c0_21, %c0_22] : memref<256x128xf32, #tpu.memory_space<vmem>>, vector<256x128xf32>
    tpu.vector_store %arg7[%c0_21, %c0_22], %43 {strides = array<i32>} : memref<256x128xf32, #tpu.memory_space<vmem>>, vector<256x128xf32>,
    return
  }
  func.func @transform_0(%arg0: i32) -> (i32, i32, i32) {
    %c0_i32 = arith.constant 0 : i32
    %c0_i32_0 = arith.constant 0 : i32
    %c0_i32_1 = arith.constant 0 : i32
    return %arg0, %c0_i32, %c0_i32_0 : i32, i32, i32
  }
  func.func @transform_1(%arg0: i32) -> (i32, i32) {
    %c0_i32 = arith.constant 0 : i32
    %c0_i32_0 = arith.constant 0 : i32
    %c0_i32_1 = arith.constant 0 : i32
    return %c0_i32, %c0_i32_0 : i32, i32
  }
  func.func @transform_2(%arg0: i32) -> (i32, i32) {
    %c0_i32 = arith.constant 0 : i32
    %c0_i32_0 = arith.constant 0 : i32
    %c0_i32_1 = arith.constant 0 : i32
    return %c0_i32, %c0_i32_0 : i32, i32
  }
  func.func @transform_3(%arg0: i32) -> (i32, i32) {
    %c0_i32 = arith.constant 0 : i32
    %c0_i32_0 = arith.constant 0 : i32
    %c0_i32_1 = arith.constant 0 : i32
    return %c0_i32, %c0_i32_0 : i32, i32
  }
  func.func @transform_4(%arg0: i32) -> (i32, i32) {
    %c0_i32 = arith.constant 0 : i32
    %c0_i32_0 = arith.constant 0 : i32
    %c0_i32_1 = arith.constant 0 : i32
    return %c0_i32, %c0_i32_0 : i32, i32
  }
  func.func @transform_5(%arg0: i32) -> (i32, i32) {
    %c0_i32 = arith.constant 0 : i32
    %c0_i32_0 = arith.constant 0 : i32
    %c0_i32_1 = arith.constant 0 : i32
    return %c0_i32, %c0_i32_0 : i32, i32
  }
  func.func @transform_6(%arg0: i32) -> (i32, i32) {
    %c0_i32 = arith.constant 0 : i32
    %c0_i32_0 = arith.constant 0 : i32
    return %arg0, %c0_i32 : i32, i32
  }
}

</mosaic_0001>

<llo_original>
// kernel: nan_handling_encoder.2
$region0: #{nan_handling_encoder.2}
  #allocation0 [shape = 'u32[]', space=smem, size = 0x4, offset = 0x4, fixed_abs, tag = 'smem constant byte address 0x4 - core index']
  #allocation1 [shape = 'u32[144,128]{1,0:T(1,128)}', space=vmem, size = 0x12000, scoped, tag = 'internal scratch']
  #allocation2 [shape = 'f32[1,128]{1,0:T(1,128)}', space=vmem, size = 0x200, scoped, tag = 'scratch operand']
  #allocation3 [shape = 'f32[1,128]{1,0:T(1,128)}', space=vmem, size = 0x200, scoped, tag = 'scratch operand']
  %s0 = inlined_call_operand.vmem [shape: f32[64,128], index: 0, kind: input, shape index: {}]
  %s1 = inlined_call_operand.vmem [shape: f32[1,128], index: 1, kind: output, shape index: {0}]
  %s2 = inlined_call_operand.vmem [shape: f32[1,128], index: 2, kind: output, shape index: {1}]
  %3 = xla_tuple %s1, %s2
  %s4 = sld [smem:[#allocation0]]
  $region30: #{nan_handling_encoder.2} parent=0
    _
  %s6 = ssub.s32 1, %s4
  %s7 = scalar_select 0, %s6, %s4
  // Predicated region
  $region2: #{nan_handling_encoder.2} parent=0 // pred_check
    _
  $region3: #{nan_handling_encoder.2} parent=0 // pred_check_branch
    %9 = sbr.rel (0) target = $region5
  $region4: #{nan_handling_encoder.2} parent=0 // pred_region
    _
  $region5: #{nan_handling_encoder.2} parent=0 // pred_fallthru
    _
  %p10 = scmp.eq.s32.totalorder 0, 0
  // Predicated region
  $region6: #{nan_handling_encoder.2} parent=0 // pred_check
    %p11 = pneg %p10
  $region7: #{nan_handling_encoder.2} parent=0 // pred_check_branch
    %13 = sbr.rel (%p11) target = $region9
  $region8: #{nan_handling_encoder.2} parent=0 // pred_region
    %14 = vst [vmem:[#allocation2] sm:$0x1] 0.0
    %15 = vst [vmem:[#allocation3] sm:$0x1] 0.0
  $region9: #{nan_handling_encoder.2} parent=0 // pred_fallthru
    _
  %v16 = vld [vmem:[%s0] sm:$0xff]
  %v17 = vld [vmem:[%s0 + $0x8] sm:$0xff]
  %v18 = vld [vmem:[%s0 + $0x10] sm:$0xff]
  %v19 = vld [vmem:[%s0 + $0x18] sm:$0xff]
  %v20 = vld [vmem:[%s0 + $0x20] sm:$0xff]
  %v21 = vld [vmem:[%s0 + $0x28] sm:$0xff]
  %v22 = vld [vmem:[%s0 + $0x30] sm:$0xff]
  %v23 = vld [vmem:[%s0 + $0x38] sm:$0xff]
  %vm24 = vcmp.ne.f32.partialorder %v16, %v16
  %vm25 = vcmp.ne.f32.partialorder %v17, %v17
  %vm26 = vcmp.ne.f32.partialorder %v18, %v18
  %vm27 = vcmp.ne.f32.partialorder %v19, %v19
  %vm28 = vcmp.ne.f32.partialorder %v20, %v20
  %vm29 = vcmp.ne.f32.partialorder %v21, %v21
  %vm30 = vcmp.ne.f32.partialorder %v22, %v22
  %vm31 = vcmp.ne.f32.partialorder %v23, %v23
  %vm32 = vcmp.eq.f32.partialorder %v16, inf
  %vm33 = vcmp.eq.f32.partialorder %v17, inf
  %vm34 = vcmp.eq.f32.partialorder %v18, inf
  %vm35 = vcmp.eq.f32.partialorder %v19, inf
  %vm36 = vcmp.eq.f32.partialorder %v20, inf
  %vm37 = vcmp.eq.f32.partialorder %v21, inf
  %vm38 = vcmp.eq.f32.partialorder %v22, inf
  %vm39 = vcmp.eq.f32.partialorder %v23, inf
  %vm40 = vcmp.eq.f32.partialorder %v16, -inf
  %vm41 = vcmp.eq.f32.partialorder %v17, -inf
  %vm42 = vcmp.eq.f32.partialorder %v18, -inf
  %vm43 = vcmp.eq.f32.partialorder %v19, -inf
  %vm44 = vcmp.eq.f32.partialorder %v20, -inf
  %vm45 = vcmp.eq.f32.partialorder %v21, -inf
  %vm46 = vcmp.eq.f32.partialorder %v22, -inf
  %vm47 = vcmp.eq.f32.partialorder %v23, -inf
  %v48 = vsel %vm32, 1, 0
  %v49 = vsel %vm33, 1, 0
  %v50 = vsel %vm34, 1, 0
  %v51 = vsel %vm35, 1, 0
  %v52 = vsel %vm36, 1, 0
  %v53 = vsel %vm37, 1, 0
  %v54 = vsel %vm38, 1, 0
  %v55 = vsel %vm39, 1, 0
  %v56 = vcvt.s32.f32 %v48
  %v57 = vcvt.s32.f32 %v49
  %v58 = vcvt.s32.f32 %v50
  %v59 = vcvt.s32.f32 %v51
  %v60 = vcvt.s32.f32 %v52
  %v61 = vcvt.s32.f32 %v53
  %v62 = vcvt.s32.f32 %v54
  %v63 = vcvt.s32.f32 %v55
  %v64 = vsel %vm40, 1, 0
  %v65 = vsel %vm41, 1, 0
  %v66 = vsel %vm42, 1, 0
  %v67 = vsel %vm43, 1, 0
  %v68 = vsel %vm44, 1, 0
  %v69 = vsel %vm45, 1, 0
  %v70 = vsel %vm46, 1, 0
  %v71 = vsel %vm47, 1, 0
  %v72 = vcvt.s32.f32 %v64
  %v73 = vcvt.s32.f32 %v65
  %v74 = vcvt.s32.f32 %v66
  %v75 = vcvt.s32.f32 %v67
  %v76 = vcvt.s32.f32 %v68
  %v77 = vcvt.s32.f32 %v69
  %v78 = vcvt.s32.f32 %v70
  %v79 = vcvt.s32.f32 %v71
  %v80 = vmul.f32 %v72, 2.0
  %v81 = vmul.f32 %v73, 2.0
  %v82 = vmul.f32 %v74, 2.0
  %v83 = vmul.f32 %v75, 2.0
  %v84 = vmul.f32 %v76, 2.0
  %v85 = vmul.f32 %v77, 2.0
  %v86 = vmul.f32 %v78, 2.0
  %v87 = vmul.f32 %v79, 2.0
  %v88 = vadd.f32 %v56, %v80
  %v89 = vadd.f32 %v57, %v81
  %v90 = vadd.f32 %v58, %v82
  %v91 = vadd.f32 %v59, %v83
  %v92 = vadd.f32 %v60, %v84
  %v93 = vadd.f32 %v61, %v85
  %v94 = vadd.f32 %v62, %v86
  %v95 = vadd.f32 %v63, %v87
  %v96 = vsel %vm24, 1, 0
  %v97 = vsel %vm25, 1, 0
  %v98 = vsel %vm26, 1, 0
  %v99 = vsel %vm27, 1, 0
  %v100 = vsel %vm28, 1, 0
  %v101 = vsel %vm29, 1, 0
  %v102 = vsel %vm30, 1, 0
  %v103 = vsel %vm31, 1, 0
  %v104 = vcvt.s32.f32 %v96
  %v105 = vcvt.s32.f32 %v97
  %v106 = vcvt.s32.f32 %v98
  %v107 = vcvt.s32.f32 %v99
  %v108 = vcvt.s32.f32 %v100
  %v109 = vcvt.s32.f32 %v101
  %v110 = vcvt.s32.f32 %v102
  %v111 = vcvt.s32.f32 %v103
  %v112 = vsub.f32 %v88, %v104
  %v113 = vsub.f32 %v89, %v105
  %v114 = vsub.f32 %v90, %v106
  %v115 = vsub.f32 %v91, %v107
  %v116 = vsub.f32 %v92, %v108
  %v117 = vsub.f32 %v93, %v109
  %v118 = vsub.f32 %v94, %v110
  %v119 = vsub.f32 %v95, %v111
  %v120 = vld [vmem:[#allocation2] sm:$0x1]
  %v121 = vadd.f32 %v112, %v113
  %v122 = vadd.f32 %v121, %v114
  %v123 = vadd.f32 %v122, %v115
  %v124 = vadd.f32 %v123, %v116
  %v125 = vadd.f32 %v124, %v117
  %v126 = vadd.f32 %v125, %v118
  %v127 = vadd.f32 %v126, %v119
  %v128 = vrot.slane %v127, 4
  %v129 = vadd.f32 %v127, %v128
  %v130 = vrot.slane %v129, 2
  %v131 = vadd.f32 %v129, %v130
  %v132 = vrot.slane %v131, 1
  %v133 = vadd.f32 %v131, %v132
  %v134 = vadd.f32 %v120, %v133
  %135 = vst [vmem:[#allocation2] sm:$0x1] %v134
  %v136 = vld [vmem:[#allocation3] sm:$0x1]
  %v137 = vmul.f32 %v112, %v112
  %v138 = vmul.f32 %v113, %v113
  %v139 = vmul.f32 %v114, %v114
  %v140 = vmul.f32 %v115, %v115
  %v141 = vmul.f32 %v116, %v116
  %v142 = vmul.f32 %v117, %v117
  %v143 = vmul.f32 %v118, %v118
  %v144 = vmul.f32 %v119, %v119
  %v145 = vadd.f32 %v137, %v138
  %v146 = vadd.f32 %v145, %v139
  %v147 = vadd.f32 %v146, %v140
  %v148 = vadd.f32 %v147, %v141
  %v149 = vadd.f32 %v148, %v142
  %v150 = vadd.f32 %v149, %v143
  %v151 = vadd.f32 %v150, %v144
  %v152 = vrot.slane %v151, 4
  %v153 = vadd.f32 %v151, %v152
  %v154 = vrot.slane %v153, 2
  %v155 = vadd.f32 %v153, %v154
  %v156 = vrot.slane %v155, 1
  %v157 = vadd.f32 %v155, %v156
  %v158 = vadd.f32 %v136, %v157
  %159 = vst [vmem:[#allocation3] sm:$0x1] %v158
  // Predicated region
  $region10: #{nan_handling_encoder.2} parent=0 // pred_check
    %p160 = pneg %p10
  $region11: #{nan_handling_encoder.2} parent=0 // pred_check_branch
    %162 = sbr.rel (%p160) target = $region13
  $region12: #{nan_handling_encoder.2} parent=0 // pred_region
    %v163 = vld [vmem:[#allocation2] sm:$0x1]
    %v164 = vrcp.pop 64.0
    %v165 = vmul.f32 %v163, %v164
    %v166 = vld [vmem:[#allocation3] sm:$0x1]
    %v167 = vmul.f32 %v163, %v165
    %v168 = vsub.f32 %v166, %v167
    %v169 = vrcp.pop 63.0
    %v170 = vmul.f32 %v168, %v169
    %v171 = vmax.f32 %v170, 0.0
    %172 = vst [vmem:[%s1] sm:$0x1] %v165
    %v173 = vrsqrt.pop %v171
    %v174 = vmul.f32 %v171, %v173
    %vm175 = vcmp.eq.f32.partialorder %v171, inf
    %v176 = vsel %vm175, %v171, %v174
    %vm177 = vcmp.eq.f32.partialorder %v171, 0.0
    %v178 = vand.u32 %v171, 2147483648
    %v179 = vsel %vm177, %v178, %v176
    %v180 = vadd.f32 %v179, 1e-06
    %v181 = vrcp.pop %v180
    %v182 = vmul.f32 1.0, %v181
    %183 = vst [vmem:[%s2] sm:$0x1] %v182
  $region13: #{nan_handling_encoder.2} parent=0 // pred_fallthru
    _
  // Predicated region
  $region14: #{nan_handling_encoder.2} parent=0 // pred_check
    _
  $region15: #{nan_handling_encoder.2} parent=0 // pred_check_branch
    %185 = sbr.rel (0) target = $region17
  $region16: #{nan_handling_encoder.2} parent=0 // pred_region
    _
  $region17: #{nan_handling_encoder.2} parent=0 // pred_fallthru
    _
  // Predicated region
  $region18: #{nan_handling_encoder.2} parent=0 // pred_check
    _
  $region19: #{nan_handling_encoder.2} parent=0 // pred_check_branch
    %187 = sbr.rel (0) target = $region21
  $region20: #{nan_handling_encoder.2} parent=0 // pred_region
    _
  $region21: #{nan_handling_encoder.2} parent=0 // pred_fallthru
    _
  // Predicated region
  $region22: #{nan_handling_encoder.2} parent=0 // pred_check
    _
  $region23: #{nan_handling_encoder.2} parent=0 // pred_check_branch
    %189 = sbr.rel (0) target = $region25
  $region24: #{nan_handling_encoder.2} parent=0 // pred_region
    _
  $region25: #{nan_handling_encoder.2} parent=0 // pred_fallthru
    _
  // Predicated region
  $region26: #{nan_handling_encoder.2} parent=0 // pred_check
    _
  $region27: #{nan_handling_encoder.2} parent=0 // pred_check_branch
    %191 = sbr.rel (0) target = $region29
  $region28: #{nan_handling_encoder.2} parent=0 // pred_region
    _
  $region29: #{nan_handling_encoder.2} parent=0 // pred_fallthru
    _

// kernel: nan_handling_encoder.3
$region0: #{nan_handling_encoder.3}
  #allocation0 [shape = 'u32[]', space=smem, size = 0x4, offset = 0x4, fixed_abs, tag = 'smem constant byte address 0x4 - core index']
  #allocation1 [shape = 'u32[144,128]{1,0:T(1,128)}', space=vmem, size = 0x12000, scoped, tag = 'internal scratch']
  %s0 = inlined_call_operand.vmem [shape: f32[64,8,16], index: 0, kind: input, shape index: {}]
  %s1 = inlined_call_operand.vmem [shape: f32[8,16], index: 1, kind: input, shape index: {}]
  %s2 = inlined_call_operand.vmem [shape: f32[8,16], index: 2, kind: input, shape index: {}]
  %s3 = inlined_call_operand.vmem [shape: f32[16,128], index: 3, kind: input, shape index: {}]
  %s4 = inlined_call_operand.vmem [shape: f32[16,128], index: 4, kind: input, shape index: {}]
  %s5 = inlined_call_operand.vmem [shape: f32[1,128], index: 5, kind: input, shape index: {}]
  %s6 = inlined_call_operand.hbm [shape: f32[512,128], index: 6, kind: output, shape index: {}]
  %s7 = sld [smem:[#allocation0]]
  $region57: #{nan_handling_encoder.3} parent=0
    _
  %s9 = ssub.s32 1, %s7
  %s10 = scalar_select 0, %s9, %s7
  $region1: #{nan_handling_encoder.3} parent=0
    #allocation2 [shape = 'u8[262144]{0}', space=vmem, size = 0x40000, scoped, tag = 'output window, operand 0']
    #allocation3 [shape = 's32[2]{0}', space=sflag, size = 0x8, scoped, tag = 'scoped memory for nan_handling_encoder.3']
    %11 = vsyncpa [#allocation3], 0
    %s12 = scalar_lea.sflag [#allocation3], 1
    %13 = vsyncpa %s12, 0
    loop: start=0, step=1, limit=4
    $region2: #{nan_handling_encoder.3} parent=1 // loop_pre_header
      _
    $region3: #{nan_handling_encoder.3} parent=1 // loop_header
      %s15 = sphi 0, %s19
      %p16 = scmp.ge.s32.totalorder %s15, 4
      %s25 = sphi 0, %s27
      %s28 = sphi 0, %s25
      %s29 = sphi 0, %s28
      %s45 = sphi 0, %s29
      %s49 = sphi 0, %s49
      %s51 = sphi 0, %s49
      %s52 = sphi 0, %s51
      %s66 = sphi 0, %s52
      %s70 = sphi 0, %s70
      %s72 = sphi 0, %s70
      %s73 = sphi 0, %s72
      %s87 = sphi 0, %s73
      %s91 = sphi 0, %s91
      %s93 = sphi 0, %s91
      %s94 = sphi 0, %s93
      %s108 = sphi 0, %s94
      %s112 = sphi 0, %s112
      %s114 = sphi 0, %s112
      %s115 = sphi 0, %s114
      %s129 = sphi 0, %s115
      %s133 = sphi 0, %s133
      %s135 = sphi 0, %s133
      %s136 = sphi 0, %s135
      %s150 = sphi 0, %s136
      %s156 = sphi 0, %s158
      %s159 = sphi 0, %s156
      %s160 = sphi 0, %s159
      %s176 = sphi 0, %s160
    $region4: #{nan_handling_encoder.3} parent=1 // loop_header_branch
      %18 = sbr.rel (%p16) target = $region8
    $region5: #{nan_handling_encoder.3} parent=1 // loop_body
      %s20 = ssub.s32 %s15, 1
      %s21 = ssub.s32 %s15, 2
      %s22 = sadd.s32 %s15, 1
      %s23 = ssub.s32 %s15, %s22
      %p24 = scmp.eq.s32.totalorder %s23, 0
      %s26 = sadd.s32 %s25, 1
      %s27 = scalar_select %p24, %s25, %s26
      %p30 = pneg %p24
      %p31 = scmp.eq.s32.totalorder %s15, 1
      %p32 = por %p30, %p31
      %p33 = scmp.ne.s32.totalorder %s25, %s28
      %p34 = scmp.eq.s32.totalorder %s15, 0
      %p35 = por %p33, %p34
      %p36 = scmp.ne.s32.totalorder %s25, %s28
      %p37 = scmp.eq.s32.totalorder %s20, 1
      %p38 = por %p36, %p37
      %p39 = scmp.ne.s32.totalorder %s28, %s29
      %p40 = scmp.eq.s32.totalorder %s20, 0
      %p41 = por %p39, %p40
      %p42 = scmp.ne.s32.totalorder %s28, %s29
      %p43 = scmp.eq.s32.totalorder %s21, 1
      %p44 = por %p42, %p43
      %p46 = scmp.ne.s32.totalorder %s29, %s45
      %p47 = scmp.eq.s32.totalorder %s21, 0
      %p48 = por %p46, %p47
      %s50 = sadd.s32 %s49, 1
      %p53 = scmp.eq.s32.totalorder %s15, 1
      %p54 = scmp.ne.s32.totalorder %s49, %s51
      %p55 = scmp.eq.s32.totalorder %s15, 0
      %p56 = por %p54, %p55
      %p57 = scmp.ne.s32.totalorder %s49, %s51
      %p58 = scmp.eq.s32.totalorder %s20, 1
      %p59 = por %p57, %p58
      %p60 = scmp.ne.s32.totalorder %s51, %s52
      %p61 = scmp.eq.s32.totalorder %s20, 0
      %p62 = por %p60, %p61
      %p63 = scmp.ne.s32.totalorder %s51, %s52
      %p64 = scmp.eq.s32.totalorder %s21, 1
      %p65 = por %p63, %p64
      %p67 = scmp.ne.s32.totalorder %s52, %s66
      %p68 = scmp.eq.s32.totalorder %s21, 0
      %p69 = por %p67, %p68
      %s71 = sadd.s32 %s70, 1
      %p74 = scmp.eq.s32.totalorder %s15, 1
      %p75 = scmp.ne.s32.totalorder %s70, %s72
      %p76 = scmp.eq.s32.totalorder %s15, 0
      %p77 = por %p75, %p76
      %p78 = scmp.ne.s32.totalorder %s70, %s72
      %p79 = scmp.eq.s32.totalorder %s20, 1
      %p80 = por %p78, %p79
      %p81 = scmp.ne.s32.totalorder %s72, %s73
      %p82 = scmp.eq.s32.totalorder %s20, 0
      %p83 = por %p81, %p82
      %p84 = scmp.ne.s32.totalorder %s72, %s73
      %p85 = scmp.eq.s32.totalorder %s21, 1
      %p86 = por %p84, %p85
      %p88 = scmp.ne.s32.totalorder %s73, %s87
      %p89 = scmp.eq.s32.totalorder %s21, 0
      %p90 = por %p88, %p89
      %s92 = sadd.s32 %s91, 1
      %p95 = scmp.eq.s32.totalorder %s15, 1
      %p96 = scmp.ne.s32.totalorder %s91, %s93
      %p97 = scmp.eq.s32.totalorder %s15, 0
      %p98 = por %p96, %p97
      %p99 = scmp.ne.s32.totalorder %s91, %s93
      %p100 = scmp.eq.s32.totalorder %s20, 1
      %p101 = por %p99, %p100
      %p102 = scmp.ne.s32.totalorder %s93, %s94
      %p103 = scmp.eq.s32.totalorder %s20, 0
      %p104 = por %p102, %p103
      %p105 = scmp.ne.s32.totalorder %s93, %s94
      %p106 = scmp.eq.s32.totalorder %s21, 1
      %p107 = por %p105, %p106
      %p109 = scmp.ne.s32.totalorder %s94, %s108
      %p110 = scmp.eq.s32.totalorder %s21, 0
      %p111 = por %p109, %p110
      %s113 = sadd.s32 %s112, 1
      %p116 = scmp.eq.s32.totalorder %s15, 1
      %p117 = scmp.ne.s32.totalorder %s112, %s114
      %p118 = scmp.eq.s32.totalorder %s15, 0
      %p119 = por %p117, %p118
      %p120 = scmp.ne.s32.totalorder %s112, %s114
      %p121 = scmp.eq.s32.totalorder %s20, 1
      %p122 = por %p120, %p121
      %p123 = scmp.ne.s32.totalorder %s114, %s115
      %p124 = scmp.eq.s32.totalorder %s20, 0
      %p125 = por %p123, %p124
      %p126 = scmp.ne.s32.totalorder %s114, %s115
      %p127 = scmp.eq.s32.totalorder %s21, 1
      %p128 = por %p126, %p127
      %p130 = scmp.ne.s32.totalorder %s115, %s129
      %p131 = scmp.eq.s32.totalorder %s21, 0
      %p132 = por %p130, %p131
      %s134 = sadd.s32 %s133, 1
      %p137 = scmp.eq.s32.totalorder %s15, 1
      %p138 = scmp.ne.s32.totalorder %s133, %s135
      %p139 = scmp.eq.s32.totalorder %s15, 0
      %p140 = por %p138, %p139
      %p141 = scmp.ne.s32.totalorder %s133, %s135
      %p142 = scmp.eq.s32.totalorder %s20, 1
      %p143 = por %p141, %p142
      %p144 = scmp.ne.s32.totalorder %s135, %s136
      %p145 = scmp.eq.s32.totalorder %s20, 0
      %p146 = por %p144, %p145
      %p147 = scmp.ne.s32.totalorder %s135, %s136
      %p148 = scmp.eq.s32.totalorder %s21, 1
      %p149 = por %p147, %p148
      %p151 = scmp.ne.s32.totalorder %s136, %s150
      %p152 = scmp.eq.s32.totalorder %s21, 0
      %p153 = por %p151, %p152
      %s154 = ssub.s32 %s15, %s22
      %p155 = scmp.eq.s32.totalorder %s154, 0
      %s157 = sadd.s32 %s156, 1
      %s158 = scalar_select %p155, %s156, %s157
      %p161 = pneg %p155
      %p162 = scmp.eq.s32.totalorder %s15, 1
      %p163 = por %p161, %p162
      %p164 = scmp.ne.s32.totalorder %s156, %s159
      %p165 = scmp.eq.s32.totalorder %s15, 0
      %p166 = por %p164, %p165
      %p167 = scmp.ne.s32.totalorder %s156, %s159
      %p168 = scmp.eq.s32.totalorder %s20, 1
      %p169 = por %p167, %p168
      %p170 = scmp.ne.s32.totalorder %s159, %s160
      %p171 = scmp.eq.s32.totalorder %s20, 0
      %p172 = por %p170, %p171
      %p173 = scmp.ne.s32.totalorder %s159, %s160
      %p174 = scmp.eq.s32.totalorder %s21, 1
      %p175 = por %p173, %p174
      %p177 = scmp.ne.s32.totalorder %s160, %s176
      %p178 = scmp.eq.s32.totalorder %s21, 0
      %p179 = por %p177, %p178
      %p180 = scmp.le.s32.totalorder 1, %s15
      %p181 = scmp.lt.s32.totalorder %s15, 3
      %p182 = pnand %p180, %p181
      %p183 = pneg %p182
      // Predicated region
      $region9: #{nan_handling_encoder.3} parent=5 // pred_check
        _
      $region10: #{nan_handling_encoder.3} parent=5 // pred_check_branch
        %185 = sbr.rel (%p182) target = $region12
      $region11: #{nan_handling_encoder.3} parent=5 // pred_region
        %s186 = ssub.s32 %s15, 1
        // Predicated region
        $region13: #{nan_handling_encoder.3} parent=11 // pred_check
          %p187 = pneg %p62
        $region14: #{nan_handling_encoder.3} parent=11 // pred_check_branch
          %189 = sbr.rel (%p187) target = $region16
        $region15: #{nan_handling_encoder.3} parent=11 // pred_region
          _
        $region16: #{nan_handling_encoder.3} parent=11 // pred_fallthru
          _
        // Predicated region
        $region17: #{nan_handling_encoder.3} parent=11 // pred_check
          %p190 = pneg %p83
        $region18: #{nan_handling_encoder.3} parent=11 // pred_check_branch
          %192 = sbr.rel (%p190) target = $region20
        $region19: #{nan_handling_encoder.3} parent=11 // pred_region
          _
        $region20: #{nan_handling_encoder.3} parent=11 // pred_fallthru
          _
        // Predicated region
        $region21: #{nan_handling_encoder.3} parent=11 // pred_check
          %p193 = pneg %p104
        $region22: #{nan_handling_encoder.3} parent=11 // pred_check_branch
          %195 = sbr.rel (%p193) target = $region24
        $region23: #{nan_handling_encoder.3} parent=11 // pred_region
          _
        $region24: #{nan_handling_encoder.3} parent=11 // pred_fallthru
          _
        // Predicated region
        $region25: #{nan_handling_encoder.3} parent=11 // pred_check
          %p196 = pneg %p125
        $region26: #{nan_handling_encoder.3} parent=11 // pred_check_branch
          %198 = sbr.rel (%p196) target = $region28
        $region27: #{nan_handling_encoder.3} parent=11 // pred_region
          _
        $region28: #{nan_handling_encoder.3} parent=11 // pred_fallthru
          _
        // Predicated region
        $region29: #{nan_handling_encoder.3} parent=11 // pred_check
          %p199 = pneg %p146
        $region30: #{nan_handling_encoder.3} parent=11 // pred_check_branch
          %201 = sbr.rel (%p199) target = $region32
        $region31: #{nan_handling_encoder.3} parent=11 // pred_region
          _
        $region32: #{nan_handling_encoder.3} parent=11 // pred_fallthru
          _
      $region12: #{nan_handling_encoder.3} parent=5 // pred_fallthru
        _
      %p202 = scmp.lt.s32.totalorder %s15, 2
      // Predicated region
      $region33: #{nan_handling_encoder.3} parent=5 // pred_check
        %p203 = pneg %p202
      $region34: #{nan_handling_encoder.3} parent=5 // pred_check_branch
        %205 = sbr.rel (%p203) target = $region36
      $region35: #{nan_handling_encoder.3} parent=5 // pred_region
        // Predicated region
        $region37: #{nan_handling_encoder.3} parent=35 // pred_check
          %p206 = pneg %p35
        $region38: #{nan_handling_encoder.3} parent=35 // pred_check_branch
          %208 = sbr.rel (%p206) target = $region40
        $region39: #{nan_handling_encoder.3} parent=35 // pred_region
          %s209 = smul.u32 32, %s15
          %p210 = scmp.lt.s32.totalorder %s209, 63
          %s211 = scalar_select %p210, %s209, 63
          %s212 = smul.addr %s211, 8
          %s213 = scalar_lea.vmem %s0, %s212
          %s214 = smul.u32 32, %s15
        $region40: #{nan_handling_encoder.3} parent=35 // pred_fallthru
          _
      $region36: #{nan_handling_encoder.3} parent=5 // pred_fallthru
        _
      %p215 = scmp.le.s32.totalorder 1, %s15
      %p216 = scmp.lt.s32.totalorder %s15, 3
      %p217 = pnand %p215, %p216
      %p218 = pneg %p217
      // Predicated region
      $region41: #{nan_handling_encoder.3} parent=5 // pred_check
        _
      $region42: #{nan_handling_encoder.3} parent=5 // pred_check_branch
        %220 = sbr.rel (%p217) target = $region44
      $region43: #{nan_handling_encoder.3} parent=5 // pred_region
        %s221 = ssub.s32 %s15, 1
        %s222 = smul.u32 32, %s20
        %p223 = scmp.lt.s32.totalorder %s222, 63
        %s224 = scalar_select %p223, %s222, 63
        %s225 = smul.addr %s224, 8
        %s226 = scalar_lea.vmem %s0, %s225
        %p227 = pneg %p41
        %p228 = pneg %p38
        %p229 = pneg %p62
        %p230 = pneg %p59
        %p231 = pneg %p83
        %p232 = pneg %p80
        %p233 = pneg %p104
        %p234 = pneg %p101
        %p235 = pneg %p125
        %p236 = pneg %p122
        %p237 = pneg %p146
        %p238 = pneg %p143
        %p239 = pneg %p172
        %p240 = pneg %p169
        %s241 = sand.u32 %s159, 1
        %s242 = scalar_lea.sflag [#allocation3], %s241
        %s243 = sand.u32 %s159, 1
        %s244 = smul.addr %s243, 256
        %s245 = scalar_lea.vmem [#allocation2], %s244
        %s246 = smul.u32 32, %s20
        %p247 = scmp.lt.s32.totalorder %s246, 63
        %s248 = scalar_select %p247, %s246, 63
        %s249 = smul.addr %s248, 8
        %s250 = scalar_lea.vmem %s0, %s249
        %s251 = smul.u32 32, %s20
        %s252 = smul.u32 32, %s20
        %v253 = vld [vmem:[%s250] sm:$0xff]
        %v254 = vld [vmem:[%s250 + $0x8] sm:$0xff]
        %v255 = vld [vmem:[%s250 + $0x10] sm:$0xff]
        %v256 = vld [vmem:[%s250 + $0x18] sm:$0xff]
        %v257 = vld [vmem:[%s250 + $0x20] sm:$0xff]
        %v258 = vld [vmem:[%s250 + $0x28] sm:$0xff]
        %v259 = vld [vmem:[%s250 + $0x30] sm:$0xff]
        %v260 = vld [vmem:[%s250 + $0x38] sm:$0xff]
        %v261 = vld [vmem:[%s250 + $0x40] sm:$0xff]
        %v262 = vld [vmem:[%s250 + $0x48] sm:$0xff]
        %v263 = vld [vmem:[%s250 + $0x50] sm:$0xff]
        %v264 = vld [vmem:[%s250 + $0x58] sm:$0xff]
        %v265 = vld [vmem:[%s250 + $0x60] sm:$0xff]
        %v266 = vld [vmem:[%s250 + $0x68] sm:$0xff]
        %v267 = vld [vmem:[%s250 + $0x70] sm:$0xff]
        %v268 = vld [vmem:[%s250 + $0x78] sm:$0xff]
        %v269 = vld [vmem:[%s250 + $0x80] sm:$0xff]
        %v270 = vld [vmem:[%s250 + $0x88] sm:$0xff]
        %v271 = vld [vmem:[%s250 + $0x90] sm:$0xff]
        %v272 = vld [vmem:[%s250 + $0x98] sm:$0xff]
        %v273 = vld [vmem:[%s250 + $0xa0] sm:$0xff]
        %v274 = vld [vmem:[%s250 + $0xa8] sm:$0xff]
        %v275 = vld [vmem:[%s250 + $0xb0] sm:$0xff]
        %v276 = vld [vmem:[%s250 + $0xb8] sm:$0xff]
        %v277 = vld [vmem:[%s250 + $0xc0] sm:$0xff]
        %v278 = vld [vmem:[%s250 + $0xc8] sm:$0xff]
        %v279 = vld [vmem:[%s250 + $0xd0] sm:$0xff]
        %v280 = vld [vmem:[%s250 + $0xd8] sm:$0xff]
        %v281 = vld [vmem:[%s250 + $0xe0] sm:$0xff]
        %v282 = vld [vmem:[%s250 + $0xe8] sm:$0xff]
        %v283 = vld [vmem:[%s250 + $0xf0] sm:$0xff]
        %v284 = vld [vmem:[%s250 + $0xf8] sm:$0xff]
        %vm285 = vcmp.ne.f32.partialorder %v253, %v253
        %vm286 = vcmp.ne.f32.partialorder %v254, %v254
        %vm287 = vcmp.ne.f32.partialorder %v255, %v255
        %vm288 = vcmp.ne.f32.partialorder %v256, %v256
        %vm289 = vcmp.ne.f32.partialorder %v257, %v257
        %vm290 = vcmp.ne.f32.partialorder %v258, %v258
        %vm291 = vcmp.ne.f32.partialorder %v259, %v259
        %vm292 = vcmp.ne.f32.partialorder %v260, %v260
        %vm293 = vcmp.ne.f32.partialorder %v261, %v261
        %vm294 = vcmp.ne.f32.partialorder %v262, %v262
        %vm295 = vcmp.ne.f32.partialorder %v263, %v263
        %vm296 = vcmp.ne.f32.partialorder %v264, %v264
        %vm297 = vcmp.ne.f32.partialorder %v265, %v265
        %vm298 = vcmp.ne.f32.partialorder %v266, %v266
        %vm299 = vcmp.ne.f32.partialorder %v267, %v267
        %vm300 = vcmp.ne.f32.partialorder %v268, %v268
        %vm301 = vcmp.ne.f32.partialorder %v269, %v269
        %vm302 = vcmp.ne.f32.partialorder %v270, %v270
        %vm303 = vcmp.ne.f32.partialorder %v271, %v271
        %vm304 = vcmp.ne.f32.partialorder %v272, %v272
        %vm305 = vcmp.ne.f32.partialorder %v273, %v273
        %vm306 = vcmp.ne.f32.partialorder %v274, %v274
        %vm307 = vcmp.ne.f32.partialorder %v275, %v275
        %vm308 = vcmp.ne.f32.partialorder %v276, %v276
        %vm309 = vcmp.ne.f32.partialorder %v277, %v277
        %vm310 = vcmp.ne.f32.partialorder %v278, %v278
        %vm311 = vcmp.ne.f32.partialorder %v279, %v279
        %vm312 = vcmp.ne.f32.partialorder %v280, %v280
        %vm313 = vcmp.ne.f32.partialorder %v281, %v281
        %vm314 = vcmp.ne.f32.partialorder %v282, %v282
        %vm315 = vcmp.ne.f32.partialorder %v283, %v283
        %vm316 = vcmp.ne.f32.partialorder %v284, %v284
        %vm317 = vcmp.eq.f32.partialorder %v253, inf
        %vm318 = vcmp.eq.f32.partialorder %v254, inf
        %vm319 = vcmp.eq.f32.partialorder %v255, inf
        %vm320 = vcmp.eq.f32.partialorder %v256, inf
        %vm321 = vcmp.eq.f32.partialorder %v257, inf
        %vm322 = vcmp.eq.f32.partialorder %v258, inf
        %vm323 = vcmp.eq.f32.partialorder %v259, inf
        %vm324 = vcmp.eq.f32.partialorder %v260, inf
        %vm325 = vcmp.eq.f32.partialorder %v261, inf
        %vm326 = vcmp.eq.f32.partialorder %v262, inf
        %vm327 = vcmp.eq.f32.partialorder %v263, inf
        %vm328 = vcmp.eq.f32.partialorder %v264, inf
        %vm329 = vcmp.eq.f32.partialorder %v265, inf
        %vm330 = vcmp.eq.f32.partialorder %v266, inf
        %vm331 = vcmp.eq.f32.partialorder %v267, inf
        %vm332 = vcmp.eq.f32.partialorder %v268, inf
        %vm333 = vcmp.eq.f32.partialorder %v269, inf
        %vm334 = vcmp.eq.f32.partialorder %v270, inf
        %vm335 = vcmp.eq.f32.partialorder %v271, inf
        %vm336 = vcmp.eq.f32.partialorder %v272, inf
        %vm337 = vcmp.eq.f32.partialorder %v273, inf
        %vm338 = vcmp.eq.f32.partialorder %v274, inf
        %vm339 = vcmp.eq.f32.partialorder %v275, inf
        %vm340 = vcmp.eq.f32.partialorder %v276, inf
        %vm341 = vcmp.eq.f32.partialorder %v277, inf
        %vm342 = vcmp.eq.f32.partialorder %v278, inf
        %vm343 = vcmp.eq.f32.partialorder %v279, inf
        %vm344 = vcmp.eq.f32.partialorder %v280, inf
        %vm345 = vcmp.eq.f32.partialorder %v281, inf
        %vm346 = vcmp.eq.f32.partialorder %v282, inf
        %vm347 = vcmp.eq.f32.partialorder %v283, inf
        %vm348 = vcmp.eq.f32.partialorder %v284, inf
        %vm349 = vcmp.eq.f32.partialorder %v253, -inf
        %vm350 = vcmp.eq.f32.partialorder %v254, -inf
        %vm351 = vcmp.eq.f32.partialorder %v255, -inf
        %vm352 = vcmp.eq.f32.partialorder %v256, -inf
        %vm353 = vcmp.eq.f32.partialorder %v257, -inf
        %vm354 = vcmp.eq.f32.partialorder %v258, -inf
        %vm355 = vcmp.eq.f32.partialorder %v259, -inf
        %vm356 = vcmp.eq.f32.partialorder %v260, -inf
        %vm357 = vcmp.eq.f32.partialorder %v261, -inf
        %vm358 = vcmp.eq.f32.partialorder %v262, -inf
        %vm359 = vcmp.eq.f32.partialorder %v263, -inf
        %vm360 = vcmp.eq.f32.partialorder %v264, -inf
        %vm361 = vcmp.eq.f32.partialorder %v265, -inf
        %vm362 = vcmp.eq.f32.partialorder %v266, -inf
        %vm363 = vcmp.eq.f32.partialorder %v267, -inf
        %vm364 = vcmp.eq.f32.partialorder %v268, -inf
        %vm365 = vcmp.eq.f32.partialorder %v269, -inf
        %vm366 = vcmp.eq.f32.partialorder %v270, -inf
        %vm367 = vcmp.eq.f32.partialorder %v271, -inf
        %vm368 = vcmp.eq.f32.partialorder %v272, -inf
        %vm369 = vcmp.eq.f32.partialorder %v273, -inf
        %vm370 = vcmp.eq.f32.partialorder %v274, -inf
        %vm371 = vcmp.eq.f32.partialorder %v275, -inf
        %vm372 = vcmp.eq.f32.partialorder %v276, -inf
        %vm373 = vcmp.eq.f32.partialorder %v277, -inf
        %vm374 = vcmp.eq.f32.partialorder %v278, -inf
        %vm375 = vcmp.eq.f32.partialorder %v279, -inf
        %vm376 = vcmp.eq.f32.partialorder %v280, -inf
        %vm377 = vcmp.eq.f32.partialorder %v281, -inf
        %vm378 = vcmp.eq.f32.partialorder %v282, -inf
        %vm379 = vcmp.eq.f32.partialorder %v283, -inf
        %vm380 = vcmp.eq.f32.partialorder %v284, -inf
        %v381 = vsel %vm317, 1, 0
        %v382 = vsel %vm318, 1, 0
        %v383 = vsel %vm319, 1, 0
        %v384 = vsel %vm320, 1, 0
        %v385 = vsel %vm321, 1, 0
        %v386 = vsel %vm322, 1, 0
        %v387 = vsel %vm323, 1, 0
        %v388 = vsel %vm324, 1, 0
        %v389 = vsel %vm325, 1, 0
        %v390 = vsel %vm326, 1, 0
        %v391 = vsel %vm327, 1, 0
        %v392 = vsel %vm328, 1, 0
        %v393 = vsel %vm329, 1, 0
        %v394 = vsel %vm330, 1, 0
        %v395 = vsel %vm331, 1, 0
        %v396 = vsel %vm332, 1, 0
        %v397 = vsel %vm333, 1, 0
        %v398 = vsel %vm334, 1, 0
        %v399 = vsel %vm335, 1, 0
        %v400 = vsel %vm336, 1, 0
        %v401 = vsel %vm337, 1, 0
        %v402 = vsel %vm338, 1, 0
        %v403 = vsel %vm339, 1, 0
        %v404 = vsel %vm340, 1, 0
        %v405 = vsel %vm341, 1, 0
        %v406 = vsel %vm342, 1, 0
        %v407 = vsel %vm343, 1, 0
        %v408 = vsel %vm344, 1, 0
        %v409 = vsel %vm345, 1, 0
        %v410 = vsel %vm346, 1, 0
        %v411 = vsel %vm347, 1, 0
        %v412 = vsel %vm348, 1, 0
        %v413 = vcvt.s32.f32 %v381
        %v414 = vcvt.s32.f32 %v382
        %v415 = vcvt.s32.f32 %v383
        %v416 = vcvt.s32.f32 %v384
        %v417 = vcvt.s32.f32 %v385
        %v418 = vcvt.s32.f32 %v386
        %v419 = vcvt.s32.f32 %v387
        %v420 = vcvt.s32.f32 %v388
        %v421 = vcvt.s32.f32 %v389
        %v422 = vcvt.s32.f32 %v390
        %v423 = vcvt.s32.f32 %v391
        %v424 = vcvt.s32.f32 %v392
        %v425 = vcvt.s32.f32 %v393
        %v426 = vcvt.s32.f32 %v394
        %v427 = vcvt.s32.f32 %v395
        %v428 = vcvt.s32.f32 %v396
        %v429 = vcvt.s32.f32 %v397
        %v430 = vcvt.s32.f32 %v398
        %v431 = vcvt.s32.f32 %v399
        %v432 = vcvt.s32.f32 %v400
        %v433 = vcvt.s32.f32 %v401
        %v434 = vcvt.s32.f32 %v402
        %v435 = vcvt.s32.f32 %v403
        %v436 = vcvt.s32.f32 %v404
        %v437 = vcvt.s32.f32 %v405
        %v438 = vcvt.s32.f32 %v406
        %v439 = vcvt.s32.f32 %v407
        %v440 = vcvt.s32.f32 %v408
        %v441 = vcvt.s32.f32 %v409
        %v442 = vcvt.s32.f32 %v410
        %v443 = vcvt.s32.f32 %v411
        %v444 = vcvt.s32.f32 %v412
        %v445 = vsel %vm349, 1, 0
        %v446 = vsel %vm350, 1, 0
        %v447 = vsel %vm351, 1, 0
        %v448 = vsel %vm352, 1, 0
        %v449 = vsel %vm353, 1, 0
        %v450 = vsel %vm354, 1, 0
        %v451 = vsel %vm355, 1, 0
        %v452 = vsel %vm356, 1, 0
        %v453 = vsel %vm357, 1, 0
        %v454 = vsel %vm358, 1, 0
        %v455 = vsel %vm359, 1, 0
        %v456 = vsel %vm360, 1, 0
        %v457 = vsel %vm361, 1, 0
        %v458 = vsel %vm362, 1, 0
        %v459 = vsel %vm363, 1, 0
        %v460 = vsel %vm364, 1, 0
        %v461 = vsel %vm365, 1, 0
        %v462 = vsel %vm366, 1, 0
        %v463 = vsel %vm367, 1, 0
        %v464 = vsel %vm368, 1, 0
        %v465 = vsel %vm369, 1, 0
        %v466 = vsel %vm370, 1, 0
        %v467 = vsel %vm371, 1, 0
        %v468 = vsel %vm372, 1, 0
        %v469 = vsel %vm373, 1, 0
        %v470 = vsel %vm374, 1, 0
        %v471 = vsel %vm375, 1, 0
        %v472 = vsel %vm376, 1, 0
        %v473 = vsel %vm377, 1, 0
        %v474 = vsel %vm378, 1, 0
        %v475 = vsel %vm379, 1, 0
        %v476 = vsel %vm380, 1, 0
        %v477 = vcvt.s32.f32 %v445
        %v478 = vcvt.s32.f32 %v446
        %v479 = vcvt.s32.f32 %v447
        %v480 = vcvt.s32.f32 %v448
        %v481 = vcvt.s32.f32 %v449
        %v482 = vcvt.s32.f32 %v450
        %v483 = vcvt.s32.f32 %v451
        %v484 = vcvt.s32.f32 %v452
        %v485 = vcvt.s32.f32 %v453
        %v486 = vcvt.s32.f32 %v454
        %v487 = vcvt.s32.f32 %v455
        %v488 = vcvt.s32.f32 %v456
        %v489 = vcvt.s32.f32 %v457
        %v490 = vcvt.s32.f32 %v458
        %v491 = vcvt.s32.f32 %v459
        %v492 = vcvt.s32.f32 %v460
        %v493 = vcvt.s32.f32 %v461
        %v494 = vcvt.s32.f32 %v462
        %v495 = vcvt.s32.f32 %v463
        %v496 = vcvt.s32.f32 %v464
        %v497 = vcvt.s32.f32 %v465
        %v498 = vcvt.s32.f32 %v466
        %v499 = vcvt.s32.f32 %v467
        %v500 = vcvt.s32.f32 %v468
        %v501 = vcvt.s32.f32 %v469
        %v502 = vcvt.s32.f32 %v470
        %v503 = vcvt.s32.f32 %v471
        %v504 = vcvt.s32.f32 %v472
        %v505 = vcvt.s32.f32 %v473
        %v506 = vcvt.s32.f32 %v474
        %v507 = vcvt.s32.f32 %v475
        %v508 = vcvt.s32.f32 %v476
        %v509 = vmul.f32 %v477, 2.0
        %v510 = vmul.f32 %v478, 2.0
        %v511 = vmul.f32 %v479, 2.0
        %v512 = vmul.f32 %v480, 2.0
        %v513 = vmul.f32 %v481, 2.0
        %v514 = vmul.f32 %v482, 2.0
        %v515 = vmul.f32 %v483, 2.0
        %v516 = vmul.f32 %v484, 2.0
        %v517 = vmul.f32 %v485, 2.0
        %v518 = vmul.f32 %v486, 2.0
        %v519 = vmul.f32 %v487, 2.0
        %v520 = vmul.f32 %v488, 2.0
        %v521 = vmul.f32 %v489, 2.0
        %v522 = vmul.f32 %v490, 2.0
        %v523 = vmul.f32 %v491, 2.0
        %v524 = vmul.f32 %v492, 2.0
        %v525 = vmul.f32 %v493, 2.0
        %v526 = vmul.f32 %v494, 2.0
        %v527 = vmul.f32 %v495, 2.0
        %v528 = vmul.f32 %v496, 2.0
        %v529 = vmul.f32 %v497, 2.0
        %v530 = vmul.f32 %v498, 2.0
        %v531 = vmul.f32 %v499, 2.0
        %v532 = vmul.f32 %v500, 2.0
        %v533 = vmul.f32 %v501, 2.0
        %v534 = vmul.f32 %v502, 2.0
        %v535 = vmul.f32 %v503, 2.0
        %v536 = vmul.f32 %v504, 2.0
        %v537 = vmul.f32 %v505, 2.0
        %v538 = vmul.f32 %v506, 2.0
        %v539 = vmul.f32 %v507, 2.0
        %v540 = vmul.f32 %v508, 2.0
        %v541 = vadd.f32 %v413, %v509
        %v542 = vadd.f32 %v414, %v510
        %v543 = vadd.f32 %v415, %v511
        %v544 = vadd.f32 %v416, %v512
        %v545 = vadd.f32 %v417, %v513
        %v546 = vadd.f32 %v418, %v514
        %v547 = vadd.f32 %v419, %v515
        %v548 = vadd.f32 %v420, %v516
        %v549 = vadd.f32 %v421, %v517
        %v550 = vadd.f32 %v422, %v518
        %v551 = vadd.f32 %v423, %v519
        %v552 = vadd.f32 %v424, %v520
        %v553 = vadd.f32 %v425, %v521
        %v554 = vadd.f32 %v426, %v522
        %v555 = vadd.f32 %v427, %v523
        %v556 = vadd.f32 %v428, %v524
        %v557 = vadd.f32 %v429, %v525
        %v558 = vadd.f32 %v430, %v526
        %v559 = vadd.f32 %v431, %v527
        %v560 = vadd.f32 %v432, %v528
        %v561 = vadd.f32 %v433, %v529
        %v562 = vadd.f32 %v434, %v530
        %v563 = vadd.f32 %v435, %v531
        %v564 = vadd.f32 %v436, %v532
        %v565 = vadd.f32 %v437, %v533
        %v566 = vadd.f32 %v438, %v534
        %v567 = vadd.f32 %v439, %v535
        %v568 = vadd.f32 %v440, %v536
        %v569 = vadd.f32 %v441, %v537
        %v570 = vadd.f32 %v442, %v538
        %v571 = vadd.f32 %v443, %v539
        %v572 = vadd.f32 %v444, %v540
        %v573 = vsel %vm285, 1, 0
        %v574 = vsel %vm286, 1, 0
        %v575 = vsel %vm287, 1, 0
        %v576 = vsel %vm288, 1, 0
        %v577 = vsel %vm289, 1, 0
        %v578 = vsel %vm290, 1, 0
        %v579 = vsel %vm291, 1, 0
        %v580 = vsel %vm292, 1, 0
        %v581 = vsel %vm293, 1, 0
        %v582 = vsel %vm294, 1, 0
        %v583 = vsel %vm295, 1, 0
        %v584 = vsel %vm296, 1, 0
        %v585 = vsel %vm297, 1, 0
        %v586 = vsel %vm298, 1, 0
        %v587 = vsel %vm299, 1, 0
        %v588 = vsel %vm300, 1, 0
        %v589 = vsel %vm301, 1, 0
        %v590 = vsel %vm302, 1, 0
        %v591 = vsel %vm303, 1, 0
        %v592 = vsel %vm304, 1, 0
        %v593 = vsel %vm305, 1, 0
        %v594 = vsel %vm306, 1, 0
        %v595 = vsel %vm307, 1, 0
        %v596 = vsel %vm308, 1, 0
        %v597 = vsel %vm309, 1, 0
        %v598 = vsel %vm310, 1, 0
        %v599 = vsel %vm311, 1, 0
        %v600 = vsel %vm312, 1, 0
        %v601 = vsel %vm313, 1, 0
        %v602 = vsel %vm314, 1, 0
        %v603 = vsel %vm315, 1, 0
        %v604 = vsel %vm316, 1, 0
        %v605 = vcvt.s32.f32 %v573
        %v606 = vcvt.s32.f32 %v574
        %v607 = vcvt.s32.f32 %v575
        %v608 = vcvt.s32.f32 %v576
        %v609 = vcvt.s32.f32 %v577
        %v610 = vcvt.s32.f32 %v578
        %v611 = vcvt.s32.f32 %v579
        %v612 = vcvt.s32.f32 %v580
        %v613 = vcvt.s32.f32 %v581
        %v614 = vcvt.s32.f32 %v582
        %v615 = vcvt.s32.f32 %v583
        %v616 = vcvt.s32.f32 %v584
        %v617 = vcvt.s32.f32 %v585
        %v618 = vcvt.s32.f32 %v586
        %v619 = vcvt.s32.f32 %v587
        %v620 = vcvt.s32.f32 %v588
        %v621 = vcvt.s32.f32 %v589
        %v622 = vcvt.s32.f32 %v590
        %v623 = vcvt.s32.f32 %v591
        %v624 = vcvt.s32.f32 %v592
        %v625 = vcvt.s32.f32 %v593
        %v626 = vcvt.s32.f32 %v594
        %v627 = vcvt.s32.f32 %v595
        %v628 = vcvt.s32.f32 %v596
        %v629 = vcvt.s32.f32 %v597
        %v630 = vcvt.s32.f32 %v598
        %v631 = vcvt.s32.f32 %v599
        %v632 = vcvt.s32.f32 %v600
        %v633 = vcvt.s32.f32 %v601
        %v634 = vcvt.s32.f32 %v602
        %v635 = vcvt.s32.f32 %v603
        %v636 = vcvt.s32.f32 %v604
        %v637 = vsub.f32 %v541, %v605
        %v638 = vsub.f32 %v542, %v606
        %v639 = vsub.f32 %v543, %v607
        %v640 = vsub.f32 %v544, %v608
        %v641 = vsub.f32 %v545, %v609
        %v642 = vsub.f32 %v546, %v610
        %v643 = vsub.f32 %v547, %v611
        %v644 = vsub.f32 %v548, %v612
        %v645 = vsub.f32 %v549, %v613
        %v646 = vsub.f32 %v550, %v614
        %v647 = vsub.f32 %v551, %v615
        %v648 = vsub.f32 %v552, %v616
        %v649 = vsub.f32 %v553, %v617
        %v650 = vsub.f32 %v554, %v618
        %v651 = vsub.f32 %v555, %v619
        %v652 = vsub.f32 %v556, %v620
        %v653 = vsub.f32 %v557, %v621
        %v654 = vsub.f32 %v558, %v622
        %v655 = vsub.f32 %v559, %v623
        %v656 = vsub.f32 %v560, %v624
        %v657 = vsub.f32 %v561, %v625
        %v658 = vsub.f32 %v562, %v626
        %v659 = vsub.f32 %v563, %v627
        %v660 = vsub.f32 %v564, %v628
        %v661 = vsub.f32 %v565, %v629
        %v662 = vsub.f32 %v566, %v630
        %v663 = vsub.f32 %v567, %v631
        %v664 = vsub.f32 %v568, %v632
        %v665 = vsub.f32 %v569, %v633
        %v666 = vsub.f32 %v570, %v634
        %v667 = vsub.f32 %v571, %v635
        %v668 = vsub.f32 %v572, %v636
        %v669 = vmax.f32 %v253, -3.4028235e+38
        %v670 = vmax.f32 %v254, -3.4028235e+38
        %v671 = vmax.f32 %v255, -3.4028235e+38
        %v672 = vmax.f32 %v256, -3.4028235e+38
        %v673 = vmax.f32 %v257, -3.4028235e+38
        %v674 = vmax.f32 %v258, -3.4028235e+38
        %v675 = vmax.f32 %v259, -3.4028235e+38
        %v676 = vmax.f32 %v260, -3.4028235e+38
        %v677 = vmax.f32 %v261, -3.4028235e+38
        %v678 = vmax.f32 %v262, -3.4028235e+38
        %v679 = vmax.f32 %v263, -3.4028235e+38
        %v680 = vmax.f32 %v264, -3.4028235e+38
        %v681 = vmax.f32 %v265, -3.4028235e+38
        %v682 = vmax.f32 %v266, -3.4028235e+38
        %v683 = vmax.f32 %v267, -3.4028235e+38
        %v684 = vmax.f32 %v268, -3.4028235e+38
        %v685 = vmax.f32 %v269, -3.4028235e+38
        %v686 = vmax.f32 %v270, -3.4028235e+38
        %v687 = vmax.f32 %v271, -3.4028235e+38
        %v688 = vmax.f32 %v272, -3.4028235e+38
        %v689 = vmax.f32 %v273, -3.4028235e+38
        %v690 = vmax.f32 %v274, -3.4028235e+38
        %v691 = vmax.f32 %v275, -3.4028235e+38
        %v692 = vmax.f32 %v276, -3.4028235e+38
        %v693 = vmax.f32 %v277, -3.4028235e+38
        %v694 = vmax.f32 %v278, -3.4028235e+38
        %v695 = vmax.f32 %v279, -3.4028235e+38
        %v696 = vmax.f32 %v280, -3.4028235e+38
        %v697 = vmax.f32 %v281, -3.4028235e+38
        %v698 = vmax.f32 %v282, -3.4028235e+38
        %v699 = vmax.f32 %v283, -3.4028235e+38
        %v700 = vmax.f32 %v284, -3.4028235e+38
        %v701 = vmin.f32 %v669, 3.4028235e+38
        %v702 = vmin.f32 %v670, 3.4028235e+38
        %v703 = vmin.f32 %v671, 3.4028235e+38
        %v704 = vmin.f32 %v672, 3.4028235e+38
        %v705 = vmin.f32 %v673, 3.4028235e+38
        %v706 = vmin.f32 %v674, 3.4028235e+38
        %v707 = vmin.f32 %v675, 3.4028235e+38
        %v708 = vmin.f32 %v676, 3.4028235e+38
        %v709 = vmin.f32 %v677, 3.4028235e+38
        %v710 = vmin.f32 %v678, 3.4028235e+38
        %v711 = vmin.f32 %v679, 3.4028235e+38
        %v712 = vmin.f32 %v680, 3.4028235e+38
        %v713 = vmin.f32 %v681, 3.4028235e+38
        %v714 = vmin.f32 %v682, 3.4028235e+38
        %v715 = vmin.f32 %v683, 3.4028235e+38
        %v716 = vmin.f32 %v684, 3.4028235e+38
        %v717 = vmin.f32 %v685, 3.4028235e+38
        %v718 = vmin.f32 %v686, 3.4028235e+38
        %v719 = vmin.f32 %v687, 3.4028235e+38
        %v720 = vmin.f32 %v688, 3.4028235e+38
        %v721 = vmin.f32 %v689, 3.4028235e+38
        %v722 = vmin.f32 %v690, 3.4028235e+38
        %v723 = vmin.f32 %v691, 3.4028235e+38
        %v724 = vmin.f32 %v692, 3.4028235e+38
        %v725 = vmin.f32 %v693, 3.4028235e+38
        %v726 = vmin.f32 %v694, 3.4028235e+38
        %v727 = vmin.f32 %v695, 3.4028235e+38
        %v728 = vmin.f32 %v696, 3.4028235e+38
        %v729 = vmin.f32 %v697, 3.4028235e+38
        %v730 = vmin.f32 %v698, 3.4028235e+38
        %v731 = vmin.f32 %v699, 3.4028235e+38
        %v732 = vmin.f32 %v700, 3.4028235e+38
        %v733 = vsel %vm285, 0.0, %v701
        %v734 = vsel %vm286, 0.0, %v702
        %v735 = vsel %vm287, 0.0, %v703
        %v736 = vsel %vm288, 0.0, %v704
        %v737 = vsel %vm289, 0.0, %v705
        %v738 = vsel %vm290, 0.0, %v706
        %v739 = vsel %vm291, 0.0, %v707
        %v740 = vsel %vm292, 0.0, %v708
        %v741 = vsel %vm293, 0.0, %v709
        %v742 = vsel %vm294, 0.0, %v710
        %v743 = vsel %vm295, 0.0, %v711
        %v744 = vsel %vm296, 0.0, %v712
        %v745 = vsel %vm297, 0.0, %v713
        %v746 = vsel %vm298, 0.0, %v714
        %v747 = vsel %vm299, 0.0, %v715
        %v748 = vsel %vm300, 0.0, %v716
        %v749 = vsel %vm301, 0.0, %v717
        %v750 = vsel %vm302, 0.0, %v718
        %v751 = vsel %vm303, 0.0, %v719
        %v752 = vsel %vm304, 0.0, %v720
        %v753 = vsel %vm305, 0.0, %v721
        %v754 = vsel %vm306, 0.0, %v722
        %v755 = vsel %vm307, 0.0, %v723
        %v756 = vsel %vm308, 0.0, %v724
        %v757 = vsel %vm309, 0.0, %v725
        %v758 = vsel %vm310, 0.0, %v726
        %v759 = vsel %vm311, 0.0, %v727
        %v760 = vsel %vm312, 0.0, %v728
        %v761 = vsel %vm313, 0.0, %v729
        %v762 = vsel %vm314, 0.0, %v730
        %v763 = vsel %vm315, 0.0, %v731
        %v764 = vsel %vm316, 0.0, %v732
        %v765 = vld [vmem:[%s1] sm:$0xff]
        %v766 = vsub.f32 %v637, %v765
        %v767 = vsub.f32 %v638, %v765
        %v768 = vsub.f32 %v639, %v765
        %v769 = vsub.f32 %v640, %v765
        %v770 = vsub.f32 %v641, %v765
        %v771 = vsub.f32 %v642, %v765
        %v772 = vsub.f32 %v643, %v765
        %v773 = vsub.f32 %v644, %v765
        %v774 = vsub.f32 %v645, %v765
        %v775 = vsub.f32 %v646, %v765
        %v776 = vsub.f32 %v647, %v765
        %v777 = vsub.f32 %v648, %v765
        %v778 = vsub.f32 %v649, %v765
        %v779 = vsub.f32 %v650, %v765
        %v780 = vsub.f32 %v651, %v765
        %v781 = vsub.f32 %v652, %v765
        %v782 = vsub.f32 %v653, %v765
        %v783 = vsub.f32 %v654, %v765
        %v784 = vsub.f32 %v655, %v765
        %v785 = vsub.f32 %v656, %v765
        %v786 = vsub.f32 %v657, %v765
        %v787 = vsub.f32 %v658, %v765
        %v788 = vsub.f32 %v659, %v765
        %v789 = vsub.f32 %v660, %v765
        %v790 = vsub.f32 %v661, %v765
        %v791 = vsub.f32 %v662, %v765
        %v792 = vsub.f32 %v663, %v765
        %v793 = vsub.f32 %v664, %v765
        %v794 = vsub.f32 %v665, %v765
        %v795 = vsub.f32 %v666, %v765
        %v796 = vsub.f32 %v667, %v765
        %v797 = vsub.f32 %v668, %v765
        %v798 = vld [vmem:[%s2] sm:$0xff]
        %v799 = vmul.f32 %v766, %v798
        %v800 = vmul.f32 %v767, %v798
        %v801 = vmul.f32 %v768, %v798
        %v802 = vmul.f32 %v769, %v798
        %v803 = vmul.f32 %v770, %v798
        %v804 = vmul.f32 %v771, %v798
        %v805 = vmul.f32 %v772, %v798
        %v806 = vmul.f32 %v773, %v798
        %v807 = vmul.f32 %v774, %v798
        %v808 = vmul.f32 %v775, %v798
        %v809 = vmul.f32 %v776, %v798
        %v810 = vmul.f32 %v777, %v798
        %v811 = vmul.f32 %v778, %v798
        %v812 = vmul.f32 %v779, %v798
        %v813 = vmul.f32 %v780, %v798
        %v814 = vmul.f32 %v781, %v798
        %v815 = vmul.f32 %v782, %v798
        %v816 = vmul.f32 %v783, %v798
        %v817 = vmul.f32 %v784, %v798
        %v818 = vmul.f32 %v785, %v798
        %v819 = vmul.f32 %v786, %v798
        %v820 = vmul.f32 %v787, %v798
        %v821 = vmul.f32 %v788, %v798
        %v822 = vmul.f32 %v789, %v798
        %v823 = vmul.f32 %v790, %v798
        %v824 = vmul.f32 %v791, %v798
        %v825 = vmul.f32 %v792, %v798
        %v826 = vmul.f32 %v793, %v798
        %v827 = vmul.f32 %v794, %v798
        %v828 = vmul.f32 %v795, %v798
        %v829 = vmul.f32 %v796, %v798
        %v830 = vmul.f32 %v797, %v798
        %v831 = vmax.f32 %v799, -100.0
        %v832 = vmax.f32 %v800, -100.0
        %v833 = vmax.f32 %v801, -100.0
        %v834 = vmax.f32 %v802, -100.0
        %v835 = vmax.f32 %v803, -100.0
        %v836 = vmax.f32 %v804, -100.0
        %v837 = vmax.f32 %v805, -100.0
        %v838 = vmax.f32 %v806, -100.0
        %v839 = vmax.f32 %v807, -100.0
        %v840 = vmax.f32 %v808, -100.0
        %v841 = vmax.f32 %v809, -100.0
        %v842 = vmax.f32 %v810, -100.0
        %v843 = vmax.f32 %v811, -100.0
        %v844 = vmax.f32 %v812, -100.0
        %v845 = vmax.f32 %v813, -100.0
        %v846 = vmax.f32 %v814, -100.0
        %v847 = vmax.f32 %v815, -100.0
        %v848 = vmax.f32 %v816, -100.0
        %v849 = vmax.f32 %v817, -100.0
        %v850 = vmax.f32 %v818, -100.0
        %v851 = vmax.f32 %v819, -100.0
        %v852 = vmax.f32 %v820, -100.0
        %v853 = vmax.f32 %v821, -100.0
        %v854 = vmax.f32 %v822, -100.0
        %v855 = vmax.f32 %v823, -100.0
        %v856 = vmax.f32 %v824, -100.0
        %v857 = vmax.f32 %v825, -100.0
        %v858 = vmax.f32 %v826, -100.0
        %v859 = vmax.f32 %v827, -100.0
        %v860 = vmax.f32 %v828, -100.0
        %v861 = vmax.f32 %v829, -100.0
        %v862 = vmax.f32 %v830, -100.0
        %v863 = vmin.f32 %v831, 100.0
        %v864 = vmin.f32 %v832, 100.0
        %v865 = vmin.f32 %v833, 100.0
        %v866 = vmin.f32 %v834, 100.0
        %v867 = vmin.f32 %v835, 100.0
        %v868 = vmin.f32 %v836, 100.0
        %v869 = vmin.f32 %v837, 100.0
        %v870 = vmin.f32 %v838, 100.0
        %v871 = vmin.f32 %v839, 100.0
        %v872 = vmin.f32 %v840, 100.0
        %v873 = vmin.f32 %v841, 100.0
        %v874 = vmin.f32 %v842, 100.0
        %v875 = vmin.f32 %v843, 100.0
        %v876 = vmin.f32 %v844, 100.0
        %v877 = vmin.f32 %v845, 100.0
        %v878 = vmin.f32 %v846, 100.0
        %v879 = vmin.f32 %v847, 100.0
        %v880 = vmin.f32 %v848, 100.0
        %v881 = vmin.f32 %v849, 100.0
        %v882 = vmin.f32 %v850, 100.0
        %v883 = vmin.f32 %v851, 100.0
        %v884 = vmin.f32 %v852, 100.0
        %v885 = vmin.f32 %v853, 100.0
        %v886 = vmin.f32 %v854, 100.0
        %v887 = vmin.f32 %v855, 100.0
        %v888 = vmin.f32 %v856, 100.0
        %v889 = vmin.f32 %v857, 100.0
        %v890 = vmin.f32 %v858, 100.0
        %v891 = vmin.f32 %v859, 100.0
        %v892 = vmin.f32 %v860, 100.0
        %v893 = vmin.f32 %v861, 100.0
        %v894 = vmin.f32 %v862, 100.0
        %v895 = vld [vmem:[%s3] sm:$0xff]
        %v896 = vld [vmem:[%s3 + $0x8] sm:$0xff]
        %v897 = vld [vmem:[%s4] sm:$0xff]
        %v898 = vld [vmem:[%s4 + $0x8] sm:$0xff]
        %vm899 = vcmask 130048
        %v901 = vsel %vm899, %v863, 0
        %v904 = vsel %vm899, %v864, 0
        %v907 = vsel %vm899, %v865, 0
        %v910 = vsel %vm899, %v866, 0
        %v913 = vsel %vm899, %v867, 0
        %v916 = vsel %vm899, %v868, 0
        %v919 = vsel %vm899, %v869, 0
        %v922 = vsel %vm899, %v870, 0
        %v925 = vsel %vm899, %v871, 0
        %v928 = vsel %vm899, %v872, 0
        %v931 = vsel %vm899, %v873, 0
        %v934 = vsel %vm899, %v874, 0
        %v937 = vsel %vm899, %v875, 0
        %v940 = vsel %vm899, %v876, 0
        %v943 = vsel %vm899, %v877, 0
        %v946 = vsel %vm899, %v878, 0
        %v949 = vsel %vm899, %v879, 0
        %v952 = vsel %vm899, %v880, 0
        %v955 = vsel %vm899, %v881, 0
        %v958 = vsel %vm899, %v882, 0
        %v961 = vsel %vm899, %v883, 0
        %v964 = vsel %vm899, %v884, 0
        %v967 = vsel %vm899, %v885, 0
        %v970 = vsel %vm899, %v886, 0
        %v973 = vsel %vm899, %v887, 0
        %v976 = vsel %vm899, %v888, 0
        %v979 = vsel %vm899, %v889, 0
        %v982 = vsel %vm899, %v890, 0
        %v985 = vsel %vm899, %v891, 0
        %v988 = vsel %vm899, %v892, 0
        %v991 = vsel %vm899, %v893, 0
        %v994 = vsel %vm899, %v894, 0
        %996 = vmatprep.subr.mxu0 0.0
        %997 = vmatpush1.msra.mxu0 0.0
        %998 = vmatprep.subr.mxu0 0.0
        %999 = vmatpush1.msra.mxu0 0.0
        %1000 = vmatprep.subr.mxu0 0.0
        %1001 = vmatpush1.msra.mxu0 0.0
        %1002 = vmatprep.subr.mxu0 0.0
        %1003 = vmatpush1.msra.mxu0 0.0
        %1004 = vmatprep.subr.mxu0 0.0
        %1005 = vmatpush1.msra.mxu0 0.0
        %1006 = vmatprep.subr.mxu0 0.0
        %1007 = vmatpush1.msra.mxu0 0.0
        %1008 = vmatprep.subr.mxu0 0.0
        %1009 = vmatpush1.msra.mxu0 0.0
        %1010 = vmatprep.subr.mxu0 0.0
        %1011 = vmatpush1.msra.mxu0 0.0
        %1012 = vmatprep.subr.mxu0 0.0
        %1013 = vmatpush1.msra.mxu0 0.0
        %1014 = vmatprep.subr.mxu0 0.0
        %1015 = vmatpush1.msra.mxu0 0.0
        %1016 = vmatprep.subr.mxu0 0.0
        %1017 = vmatpush1.msra.mxu0 0.0
        %1018 = vmatprep.subr.mxu0 0.0
        %1019 = vmatpush1.msra.mxu0 0.0
        %1020 = vmatprep.subr.mxu0 0.0
        %1021 = vmatpush1.msra.mxu0 0.0
        %1022 = vmatprep.subr.mxu0 0.0
        %1023 = vmatpush1.msra.mxu0 0.0
        %1024 = vmatprep.subr.mxu0 0.0
        %1025 = vmatpush1.msra.mxu0 %v898
        %1026 = vmatprep.subr.mxu0 0.0
        %1027 = vmatpush1.msra.mxu0 %v897
        %1028 = vmatprep.subr.mxu0 0.0
        %1029 = vmatpush2.msra.mxu0 0.0
        %1030 = vmatprep.subr.mxu0 0.0
        %1031 = vmatpush2.msra.mxu0 0.0
        %1032 = vmatprep.subr.mxu0 0.0
        %1033 = vmatpush2.msra.mxu0 0.0
        %1034 = vmatprep.subr.mxu0 0.0
        %1035 = vmatpush2.msra.mxu0 0.0
        %1036 = vmatprep.subr.mxu0 0.0
        %1037 = vmatpush2.msra.mxu0 0.0
        %1038 = vmatprep.subr.mxu0 0.0
        %1039 = vmatpush2.msra.mxu0 0.0
        %1040 = vmatprep.subr.mxu0 0.0
        %1041 = vmatpush2.msra.mxu0 0.0
        %1042 = vmatprep.subr.mxu0 0.0
        %1043 = vmatpush2.msra.mxu0 0.0
        %1044 = vmatprep.subr.mxu0 0.0
        %1045 = vmatpush2.msra.mxu0 0.0
        %1046 = vmatprep.subr.mxu0 0.0
        %1047 = vmatpush2.msra.mxu0 0.0
        %1048 = vmatprep.subr.mxu0 0.0
        %1049 = vmatpush2.msra.mxu0 0.0
        %1050 = vmatprep.subr.mxu0 0.0
        %1051 = vmatpush2.msra.mxu0 0.0
        %1052 = vmatprep.subr.mxu0 0.0
        %1053 = vmatpush2.msra.mxu0 0.0
        %1054 = vmatprep.subr.mxu0 0.0
        %1055 = vmatpush2.msra.mxu0 0.0
        %1056 = vmatprep.subr.mxu0 0.0
        %1057 = vmatpush2.msra.mxu0 0.0
        %1058 = vmatprep.subr.mxu0 0.0
        %1059 = vmatpush2.msra.mxu0 0.0
        %1060 = vmatprep.mubr.f32.mxu0 0.0
        %1061 = vmatmul.mubr.f32.gmra.mxu0 %v901
        %v1062 = vpop.f32.mrf.mxu0
        %v1063 = vadd.f32 0.0, %v1062
        %v1064 = vpop.f32.mrf.mxu0
        %1065 = vmatprep.mubr.f32.mxu0 0.0
        %1066 = vmatmul.mubr.f32.gmra.mxu0 %v904
        %v1067 = vpop.f32.mrf.mxu0
        %v1068 = vadd.f32 0.0, %v1067
        %v1069 = vpop.f32.mrf.mxu0
        %1070 = vmatprep.mubr.f32.mxu0 0.0
        %1071 = vmatmul.mubr.f32.gmra.mxu0 %v907
        %v1072 = vpop.f32.mrf.mxu0
        %v1073 = vadd.f32 0.0, %v1072
        %v1074 = vpop.f32.mrf.mxu0
        %1075 = vmatprep.mubr.f32.mxu0 0.0
        %1076 = vmatmul.mubr.f32.gmra.mxu0 %v910
        %v1077 = vpop.f32.mrf.mxu0
        %v1078 = vadd.f32 0.0, %v1077
        %v1079 = vpop.f32.mrf.mxu0
        %1080 = vmatprep.mubr.f32.mxu0 0.0
        %1081 = vmatmul.mubr.f32.gmra.mxu0 %v913
        %v1082 = vpop.f32.mrf.mxu0
        %v1083 = vadd.f32 0.0, %v1082
        %v1084 = vpop.f32.mrf.mxu0
        %1085 = vmatprep.mubr.f32.mxu0 0.0
        %1086 = vmatmul.mubr.f32.gmra.mxu0 %v916
        %v1087 = vpop.f32.mrf.mxu0
        %v1088 = vadd.f32 0.0, %v1087
        %v1089 = vpop.f32.mrf.mxu0
        %1090 = vmatprep.mubr.f32.mxu0 0.0
        %1091 = vmatmul.mubr.f32.gmra.mxu0 %v919
        %v1092 = vpop.f32.mrf.mxu0
        %v1093 = vadd.f32 0.0, %v1092
        %v1094 = vpop.f32.mrf.mxu0
        %1095 = vmatprep.mubr.f32.mxu0 0.0
        %1096 = vmatmul.mubr.f32.gmra.mxu0 %v922
        %v1097 = vpop.f32.mrf.mxu0
        %v1098 = vadd.f32 0.0, %v1097
        %v1099 = vpop.f32.mrf.mxu0
        %1100 = vmatprep.mubr.f32.mxu0 0.0
        %1101 = vmatmul.mubr.f32.gmra.mxu0 %v925
        %v1102 = vpop.f32.mrf.mxu0
        %v1103 = vadd.f32 0.0, %v1102
        %v1104 = vpop.f32.mrf.mxu0
        %1105 = vmatprep.mubr.f32.mxu0 0.0
        %1106 = vmatmul.mubr.f32.gmra.mxu0 %v928
        %v1107 = vpop.f32.mrf.mxu0
        %v1108 = vadd.f32 0.0, %v1107
        %v1109 = vpop.f32.mrf.mxu0
        %1110 = vmatprep.mubr.f32.mxu0 0.0
        %1111 = vmatmul.mubr.f32.gmra.mxu0 %v931
        %v1112 = vpop.f32.mrf.mxu0
        %v1113 = vadd.f32 0.0, %v1112
        %v1114 = vpop.f32.mrf.mxu0
        %1115 = vmatprep.mubr.f32.mxu0 0.0
        %1116 = vmatmul.mubr.f32.gmra.mxu0 %v934
        %v1117 = vpop.f32.mrf.mxu0
        %v1118 = vadd.f32 0.0, %v1117
        %v1119 = vpop.f32.mrf.mxu0
        %1120 = vmatprep.mubr.f32.mxu0 0.0
        %1121 = vmatmul.mubr.f32.gmra.mxu0 %v937
        %v1122 = vpop.f32.mrf.mxu0
        %v1123 = vadd.f32 0.0, %v1122
        %v1124 = vpop.f32.mrf.mxu0
        %1125 = vmatprep.mubr.f32.mxu0 0.0
        %1126 = vmatmul.mubr.f32.gmra.mxu0 %v940
        %v1127 = vpop.f32.mrf.mxu0
        %v1128 = vadd.f32 0.0, %v1127
        %v1129 = vpop.f32.mrf.mxu0
        %1130 = vmatprep.mubr.f32.mxu0 0.0
        %1131 = vmatmul.mubr.f32.gmra.mxu0 %v943
        %v1132 = vpop.f32.mrf.mxu0
        %v1133 = vadd.f32 0.0, %v1132
        %v1134 = vpop.f32.mrf.mxu0
        %1135 = vmatprep.mubr.f32.mxu0 0.0
        %1136 = vmatmul.mubr.f32.gmra.mxu0 %v946
        %v1137 = vpop.f32.mrf.mxu0
        %v1138 = vadd.f32 0.0, %v1137
        %v1139 = vpop.f32.mrf.mxu0
        %1140 = vmatprep.mubr.f32.mxu0 0.0
        %1141 = vmatmul.mubr.f32.gmra.mxu0 %v949
        %v1142 = vpop.f32.mrf.mxu0
        %v1143 = vadd.f32 0.0, %v1142
        %v1144 = vpop.f32.mrf.mxu0
        %1145 = vmatprep.mubr.f32.mxu0 0.0
        %1146 = vmatmul.mubr.f32.gmra.mxu0 %v952
        %v1147 = vpop.f32.mrf.mxu0
        %v1148 = vadd.f32 0.0, %v1147
        %v1149 = vpop.f32.mrf.mxu0
        %1150 = vmatprep.mubr.f32.mxu0 0.0
        %1151 = vmatmul.mubr.f32.gmra.mxu0 %v955
        %v1152 = vpop.f32.mrf.mxu0
        %v1153 = vadd.f32 0.0, %v1152
        %v1154 = vpop.f32.mrf.mxu0
        %1155 = vmatprep.mubr.f32.mxu0 0.0
        %1156 = vmatmul.mubr.f32.gmra.mxu0 %v958
        %v1157 = vpop.f32.mrf.mxu0
        %v1158 = vadd.f32 0.0, %v1157
        %v1159 = vpop.f32.mrf.mxu0
        %1160 = vmatprep.mubr.f32.mxu0 0.0
        %1161 = vmatmul.mubr.f32.gmra.mxu0 %v961
        %v1162 = vpop.f32.mrf.mxu0
        %v1163 = vadd.f32 0.0, %v1162
        %v1164 = vpop.f32.mrf.mxu0
        %1165 = vmatprep.mubr.f32.mxu0 0.0
        %1166 = vmatmul.mubr.f32.gmra.mxu0 %v964
        %v1167 = vpop.f32.mrf.mxu0
        %v1168 = vadd.f32 0.0, %v1167
        %v1169 = vpop.f32.mrf.mxu0
        %1170 = vmatprep.mubr.f32.mxu0 0.0
        %1171 = vmatmul.mubr.f32.gmra.mxu0 %v967
        %v1172 = vpop.f32.mrf.mxu0
        %v1173 = vadd.f32 0.0, %v1172
        %v1174 = vpop.f32.mrf.mxu0
        %1175 = vmatprep.mubr.f32.mxu0 0.0
        %1176 = vmatmul.mubr.f32.gmra.mxu0 %v970
        %v1177 = vpop.f32.mrf.mxu0
        %v1178 = vadd.f32 0.0, %v1177
        %v1179 = vpop.f32.mrf.mxu0
        %1180 = vmatprep.mubr.f32.mxu0 0.0
        %1181 = vmatmul.mubr.f32.gmra.mxu0 %v973
        %v1182 = vpop.f32.mrf.mxu0
        %v1183 = vadd.f32 0.0, %v1182
        %v1184 = vpop.f32.mrf.mxu0
        %1185 = vmatprep.mubr.f32.mxu0 0.0
        %1186 = vmatmul.mubr.f32.gmra.mxu0 %v976
        %v1187 = vpop.f32.mrf.mxu0
        %v1188 = vadd.f32 0.0, %v1187
        %v1189 = vpop.f32.mrf.mxu0
        %1190 = vmatprep.mubr.f32.mxu0 0.0
        %1191 = vmatmul.mubr.f32.gmra.mxu0 %v979
        %v1192 = vpop.f32.mrf.mxu0
        %v1193 = vadd.f32 0.0, %v1192
        %v1194 = vpop.f32.mrf.mxu0
        %1195 = vmatprep.mubr.f32.mxu0 0.0
        %1196 = vmatmul.mubr.f32.gmra.mxu0 %v982
        %v1197 = vpop.f32.mrf.mxu0
        %v1198 = vadd.f32 0.0, %v1197
        %v1199 = vpop.f32.mrf.mxu0
        %1200 = vmatprep.mubr.f32.mxu0 0.0
        %1201 = vmatmul.mubr.f32.gmra.mxu0 %v985
        %v1202 = vpop.f32.mrf.mxu0
        %v1203 = vadd.f32 0.0, %v1202
        %v1204 = vpop.f32.mrf.mxu0
        %1205 = vmatprep.mubr.f32.mxu0 0.0
        %1206 = vmatmul.mubr.f32.gmra.mxu0 %v988
        %v1207 = vpop.f32.mrf.mxu0
        %v1208 = vadd.f32 0.0, %v1207
        %v1209 = vpop.f32.mrf.mxu0
        %1210 = vmatprep.mubr.f32.mxu0 0.0
        %1211 = vmatmul.mubr.f32.gmra.mxu0 %v991
        %v1212 = vpop.f32.mrf.mxu0
        %v1213 = vadd.f32 0.0, %v1212
        %v1214 = vpop.f32.mrf.mxu0
        %1215 = vmatprep.mubr.f32.mxu0 0.0
        %1216 = vmatmul.mubr.f32.gmra.mxu0 %v994
        %v1217 = vpop.f32.mrf.mxu0
        %v1218 = vadd.f32 0.0, %v1217
        %v1219 = vpop.f32.mrf.mxu0
        %1220 = vdwg.mxu0
        %v1222 = vsel %vm899, %v733, 0
        %v1225 = vsel %vm899, %v734, 0
        %v1228 = vsel %vm899, %v735, 0
        %v1231 = vsel %vm899, %v736, 0
        %v1234 = vsel %vm899, %v737, 0
        %v1237 = vsel %vm899, %v738, 0
        %v1240 = vsel %vm899, %v739, 0
        %v1243 = vsel %vm899, %v740, 0
        %v1246 = vsel %vm899, %v741, 0
        %v1249 = vsel %vm899, %v742, 0
        %v1252 = vsel %vm899, %v743, 0
        %v1255 = vsel %vm899, %v744, 0
        %v1258 = vsel %vm899, %v745, 0
        %v1261 = vsel %vm899, %v746, 0
        %v1264 = vsel %vm899, %v747, 0
        %v1267 = vsel %vm899, %v748, 0
        %v1270 = vsel %vm899, %v749, 0
        %v1273 = vsel %vm899, %v750, 0
        %v1276 = vsel %vm899, %v751, 0
        %v1279 = vsel %vm899, %v752, 0
        %v1282 = vsel %vm899, %v753, 0
        %v1285 = vsel %vm899, %v754, 0
        %v1288 = vsel %vm899, %v755, 0
        %v1291 = vsel %vm899, %v756, 0
        %v1294 = vsel %vm899, %v757, 0
        %v1297 = vsel %vm899, %v758, 0
        %v1300 = vsel %vm899, %v759, 0
        %v1303 = vsel %vm899, %v760, 0
        %v1306 = vsel %vm899, %v761, 0
        %v1309 = vsel %vm899, %v762, 0
        %v1312 = vsel %vm899, %v763, 0
        %v1315 = vsel %vm899, %v764, 0
        %1317 = vmatprep.subr.mxu0 0.0
        %1318 = vmatpush1.msra.mxu0 0.0
        %1319 = vmatprep.subr.mxu0 0.0
        %1320 = vmatpush1.msra.mxu0 0.0
        %1321 = vmatprep.subr.mxu0 0.0
        %1322 = vmatpush1.msra.mxu0 0.0
        %1323 = vmatprep.subr.mxu0 0.0
        %1324 = vmatpush1.msra.mxu0 0.0
        %1325 = vmatprep.subr.mxu0 0.0
        %1326 = vmatpush1.msra.mxu0 0.0
        %1327 = vmatprep.subr.mxu0 0.0
        %1328 = vmatpush1.msra.mxu0 0.0
        %1329 = vmatprep.subr.mxu0 0.0
        %1330 = vmatpush1.msra.mxu0 0.0
        %1331 = vmatprep.subr.mxu0 0.0
        %1332 = vmatpush1.msra.mxu0 0.0
        %1333 = vmatprep.subr.mxu0 0.0
        %1334 = vmatpush1.msra.mxu0 0.0
        %1335 = vmatprep.subr.mxu0 0.0
        %1336 = vmatpush1.msra.mxu0 0.0
        %1337 = vmatprep.subr.mxu0 0.0
        %1338 = vmatpush1.msra.mxu0 0.0
        %1339 = vmatprep.subr.mxu0 0.0
        %1340 = vmatpush1.msra.mxu0 0.0
        %1341 = vmatprep.subr.mxu0 0.0
        %1342 = vmatpush1.msra.mxu0 0.0
        %1343 = vmatprep.subr.mxu0 0.0
        %1344 = vmatpush1.msra.mxu0 0.0
        %1345 = vmatprep.subr.mxu0 0.0
        %1346 = vmatpush1.msra.mxu0 %v896
        %1347 = vmatprep.subr.mxu0 0.0
        %1348 = vmatpush1.msra.mxu0 %v895
        %1349 = vmatprep.subr.mxu0 0.0
        %1350 = vmatpush2.msra.mxu0 0.0
        %1351 = vmatprep.subr.mxu0 0.0
        %1352 = vmatpush2.msra.mxu0 0.0
        %1353 = vmatprep.subr.mxu0 0.0
        %1354 = vmatpush2.msra.mxu0 0.0
        %1355 = vmatprep.subr.mxu0 0.0
        %1356 = vmatpush2.msra.mxu0 0.0
        %1357 = vmatprep.subr.mxu0 0.0
        %1358 = vmatpush2.msra.mxu0 0.0
        %1359 = vmatprep.subr.mxu0 0.0
        %1360 = vmatpush2.msra.mxu0 0.0
        %1361 = vmatprep.subr.mxu0 0.0
        %1362 = vmatpush2.msra.mxu0 0.0
        %1363 = vmatprep.subr.mxu0 0.0
        %1364 = vmatpush2.msra.mxu0 0.0
        %1365 = vmatprep.subr.mxu0 0.0
        %1366 = vmatpush2.msra.mxu0 0.0
        %1367 = vmatprep.subr.mxu0 0.0
        %1368 = vmatpush2.msra.mxu0 0.0
        %1369 = vmatprep.subr.mxu0 0.0
        %1370 = vmatpush2.msra.mxu0 0.0
        %1371 = vmatprep.subr.mxu0 0.0
        %1372 = vmatpush2.msra.mxu0 0.0
        %1373 = vmatprep.subr.mxu0 0.0
        %1374 = vmatpush2.msra.mxu0 0.0
        %1375 = vmatprep.subr.mxu0 0.0
        %1376 = vmatpush2.msra.mxu0 0.0
        %1377 = vmatprep.subr.mxu0 0.0
        %1378 = vmatpush2.msra.mxu0 0.0
        %1379 = vmatprep.subr.mxu0 0.0
        %1380 = vmatpush2.msra.mxu0 0.0
        %1381 = vmatprep.mubr.f32.mxu0 0.0
        %1382 = vmatmul.mubr.f32.gmra.mxu0 %v1222
        %v1383 = vpop.f32.mrf.mxu0
        %v1384 = vadd.f32 %v1063, %v1383
        %v1385 = vpop.f32.mrf.mxu0
        %1386 = vmatprep.mubr.f32.mxu0 0.0
        %1387 = vmatmul.mubr.f32.gmra.mxu0 %v1225
        %v1388 = vpop.f32.mrf.mxu0
        %v1389 = vadd.f32 %v1068, %v1388
        %v1390 = vpop.f32.mrf.mxu0
        %1391 = vmatprep.mubr.f32.mxu0 0.0
        %1392 = vmatmul.mubr.f32.gmra.mxu0 %v1228
        %v1393 = vpop.f32.mrf.mxu0
        %v1394 = vadd.f32 %v1073, %v1393
        %v1395 = vpop.f32.mrf.mxu0
        %1396 = vmatprep.mubr.f32.mxu0 0.0
        %1397 = vmatmul.mubr.f32.gmra.mxu0 %v1231
        %v1398 = vpop.f32.mrf.mxu0
        %v1399 = vadd.f32 %v1078, %v1398
        %v1400 = vpop.f32.mrf.mxu0
        %1401 = vmatprep.mubr.f32.mxu0 0.0
        %1402 = vmatmul.mubr.f32.gmra.mxu0 %v1234
        %v1403 = vpop.f32.mrf.mxu0
        %v1404 = vadd.f32 %v1083, %v1403
        %v1405 = vpop.f32.mrf.mxu0
        %1406 = vmatprep.mubr.f32.mxu0 0.0
        %1407 = vmatmul.mubr.f32.gmra.mxu0 %v1237
        %v1408 = vpop.f32.mrf.mxu0
        %v1409 = vadd.f32 %v1088, %v1408
        %v1410 = vpop.f32.mrf.mxu0
        %1411 = vmatprep.mubr.f32.mxu0 0.0
        %1412 = vmatmul.mubr.f32.gmra.mxu0 %v1240
        %v1413 = vpop.f32.mrf.mxu0
        %v1414 = vadd.f32 %v1093, %v1413
        %v1415 = vpop.f32.mrf.mxu0
        %1416 = vmatprep.mubr.f32.mxu0 0.0
        %1417 = vmatmul.mubr.f32.gmra.mxu0 %v1243
        %v1418 = vpop.f32.mrf.mxu0
        %v1419 = vadd.f32 %v1098, %v1418
        %v1420 = vpop.f32.mrf.mxu0
        %1421 = vmatprep.mubr.f32.mxu0 0.0
        %1422 = vmatmul.mubr.f32.gmra.mxu0 %v1246
        %v1423 = vpop.f32.mrf.mxu0
        %v1424 = vadd.f32 %v1103, %v1423
        %v1425 = vpop.f32.mrf.mxu0
        %1426 = vmatprep.mubr.f32.mxu0 0.0
        %1427 = vmatmul.mubr.f32.gmra.mxu0 %v1249
        %v1428 = vpop.f32.mrf.mxu0
        %v1429 = vadd.f32 %v1108, %v1428
        %v1430 = vpop.f32.mrf.mxu0
        %1431 = vmatprep.mubr.f32.mxu0 0.0
        %1432 = vmatmul.mubr.f32.gmra.mxu0 %v1252
        %v1433 = vpop.f32.mrf.mxu0
        %v1434 = vadd.f32 %v1113, %v1433
        %v1435 = vpop.f32.mrf.mxu0
        %1436 = vmatprep.mubr.f32.mxu0 0.0
        %1437 = vmatmul.mubr.f32.gmra.mxu0 %v1255
        %v1438 = vpop.f32.mrf.mxu0
        %v1439 = vadd.f32 %v1118, %v1438
        %v1440 = vpop.f32.mrf.mxu0
        %1441 = vmatprep.mubr.f32.mxu0 0.0
        %1442 = vmatmul.mubr.f32.gmra.mxu0 %v1258
        %v1443 = vpop.f32.mrf.mxu0
        %v1444 = vadd.f32 %v1123, %v1443
        %v1445 = vpop.f32.mrf.mxu0
        %1446 = vmatprep.mubr.f32.mxu0 0.0
        %1447 = vmatmul.mubr.f32.gmra.mxu0 %v1261
        %v1448 = vpop.f32.mrf.mxu0
        %v1449 = vadd.f32 %v1128, %v1448
        %v1450 = vpop.f32.mrf.mxu0
        %1451 = vmatprep.mubr.f32.mxu0 0.0
        %1452 = vmatmul.mubr.f32.gmra.mxu0 %v1264
        %v1453 = vpop.f32.mrf.mxu0
        %v1454 = vadd.f32 %v1133, %v1453
        %v1455 = vpop.f32.mrf.mxu0
        %1456 = vmatprep.mubr.f32.mxu0 0.0
        %1457 = vmatmul.mubr.f32.gmra.mxu0 %v1267
        %v1458 = vpop.f32.mrf.mxu0
        %v1459 = vadd.f32 %v1138, %v1458
        %v1460 = vpop.f32.mrf.mxu0
        %1461 = vmatprep.mubr.f32.mxu0 0.0
        %1462 = vmatmul.mubr.f32.gmra.mxu0 %v1270
        %v1463 = vpop.f32.mrf.mxu0
        %v1464 = vadd.f32 %v1143, %v1463
        %v1465 = vpop.f32.mrf.mxu0
        %1466 = vmatprep.mubr.f32.mxu0 0.0
        %1467 = vmatmul.mubr.f32.gmra.mxu0 %v1273
        %v1468 = vpop.f32.mrf.mxu0
        %v1469 = vadd.f32 %v1148, %v1468
        %v1470 = vpop.f32.mrf.mxu0
        %1471 = vmatprep.mubr.f32.mxu0 0.0
        %1472 = vmatmul.mubr.f32.gmra.mxu0 %v1276
        %v1473 = vpop.f32.mrf.mxu0
        %v1474 = vadd.f32 %v1153, %v1473
        %v1475 = vpop.f32.mrf.mxu0
        %1476 = vmatprep.mubr.f32.mxu0 0.0
        %1477 = vmatmul.mubr.f32.gmra.mxu0 %v1279
        %v1478 = vpop.f32.mrf.mxu0
        %v1479 = vadd.f32 %v1158, %v1478
        %v1480 = vpop.f32.mrf.mxu0
        %1481 = vmatprep.mubr.f32.mxu0 0.0
        %1482 = vmatmul.mubr.f32.gmra.mxu0 %v1282
        %v1483 = vpop.f32.mrf.mxu0
        %v1484 = vadd.f32 %v1163, %v1483
        %v1485 = vpop.f32.mrf.mxu0
        %1486 = vmatprep.mubr.f32.mxu0 0.0
        %1487 = vmatmul.mubr.f32.gmra.mxu0 %v1285
        %v1488 = vpop.f32.mrf.mxu0
        %v1489 = vadd.f32 %v1168, %v1488
        %v1490 = vpop.f32.mrf.mxu0
        %1491 = vmatprep.mubr.f32.mxu0 0.0
        %1492 = vmatmul.mubr.f32.gmra.mxu0 %v1288
        %v1493 = vpop.f32.mrf.mxu0
        %v1494 = vadd.f32 %v1173, %v1493
        %v1495 = vpop.f32.mrf.mxu0
        %1496 = vmatprep.mubr.f32.mxu0 0.0
        %1497 = vmatmul.mubr.f32.gmra.mxu0 %v1291
        %v1498 = vpop.f32.mrf.mxu0
        %v1499 = vadd.f32 %v1178, %v1498
        %v1500 = vpop.f32.mrf.mxu0
        %1501 = vmatprep.mubr.f32.mxu0 0.0
        %1502 = vmatmul.mubr.f32.gmra.mxu0 %v1294
        %v1503 = vpop.f32.mrf.mxu0
        %v1504 = vadd.f32 %v1183, %v1503
        %v1505 = vpop.f32.mrf.mxu0
        %1506 = vmatprep.mubr.f32.mxu0 0.0
        %1507 = vmatmul.mubr.f32.gmra.mxu0 %v1297
        %v1508 = vpop.f32.mrf.mxu0
        %v1509 = vadd.f32 %v1188, %v1508
        %v1510 = vpop.f32.mrf.mxu0
        %1511 = vmatprep.mubr.f32.mxu0 0.0
        %1512 = vmatmul.mubr.f32.gmra.mxu0 %v1300
        %v1513 = vpop.f32.mrf.mxu0
        %v1514 = vadd.f32 %v1193, %v1513
        %v1515 = vpop.f32.mrf.mxu0
        %1516 = vmatprep.mubr.f32.mxu0 0.0
        %1517 = vmatmul.mubr.f32.gmra.mxu0 %v1303
        %v1518 = vpop.f32.mrf.mxu0
        %v1519 = vadd.f32 %v1198, %v1518
        %v1520 = vpop.f32.mrf.mxu0
        %1521 = vmatprep.mubr.f32.mxu0 0.0
        %1522 = vmatmul.mubr.f32.gmra.mxu0 %v1306
        %v1523 = vpop.f32.mrf.mxu0
        %v1524 = vadd.f32 %v1203, %v1523
        %v1525 = vpop.f32.mrf.mxu0
        %1526 = vmatprep.mubr.f32.mxu0 0.0
        %1527 = vmatmul.mubr.f32.gmra.mxu0 %v1309
        %v1528 = vpop.f32.mrf.mxu0
        %v1529 = vadd.f32 %v1208, %v1528
        %v1530 = vpop.f32.mrf.mxu0
        %1531 = vmatprep.mubr.f32.mxu0 0.0
        %1532 = vmatmul.mubr.f32.gmra.mxu0 %v1312
        %v1533 = vpop.f32.mrf.mxu0
        %v1534 = vadd.f32 %v1213, %v1533
        %v1535 = vpop.f32.mrf.mxu0
        %1536 = vmatprep.mubr.f32.mxu0 0.0
        %1537 = vmatmul.mubr.f32.gmra.mxu0 %v1315
        %v1538 = vpop.f32.mrf.mxu0
        %v1539 = vadd.f32 %v1218, %v1538
        %v1540 = vpop.f32.mrf.mxu0
        %1541 = vdwg.mxu0
        %v1542 = vld [vmem:[%s5] sm:$0x1]
        %v1544 = vlaneseq
        %v1545 = vshrl.u32 %v1544, 7
        %v1546 = vsub.s32 0, %v1545
        %v1547 = vrot.slane %v1542, %v1546
        %v1549 = vadd.f32 %v1384, %v1547
        %v1550 = vadd.f32 %v1389, %v1547
        %v1551 = vadd.f32 %v1394, %v1547
        %v1552 = vadd.f32 %v1399, %v1547
        %v1553 = vadd.f32 %v1404, %v1547
        %v1554 = vadd.f32 %v1409, %v1547
        %v1555 = vadd.f32 %v1414, %v1547
        %v1556 = vadd.f32 %v1419, %v1547
        %v1557 = vadd.f32 %v1424, %v1547
        %v1558 = vadd.f32 %v1429, %v1547
        %v1559 = vadd.f32 %v1434, %v1547
        %v1560 = vadd.f32 %v1439, %v1547
        %v1561 = vadd.f32 %v1444, %v1547
        %v1562 = vadd.f32 %v1449, %v1547
        %v1563 = vadd.f32 %v1454, %v1547
        %v1564 = vadd.f32 %v1459, %v1547
        %v1565 = vadd.f32 %v1464, %v1547
        %v1566 = vadd.f32 %v1469, %v1547
        %v1567 = vadd.f32 %v1474, %v1547
        %v1568 = vadd.f32 %v1479, %v1547
        %v1569 = vadd.f32 %v1484, %v1547
        %v1570 = vadd.f32 %v1489, %v1547
        %v1571 = vadd.f32 %v1494, %v1547
        %v1572 = vadd.f32 %v1499, %v1547
        %v1573 = vadd.f32 %v1504, %v1547
        %v1574 = vadd.f32 %v1509, %v1547
        %v1575 = vadd.f32 %v1514, %v1547
        %v1576 = vadd.f32 %v1519, %v1547
        %v1577 = vadd.f32 %v1524, %v1547
        %v1578 = vadd.f32 %v1529, %v1547
        %v1579 = vadd.f32 %v1534, %v1547
        %v1580 = vadd.f32 %v1539, %v1547
        %1581 = vst [vmem:[%s245] sm:$0xff] %v1549
        %1582 = vst [vmem:[%s245 + $0x8] sm:$0xff] %v1550
        %1583 = vst [vmem:[%s245 + $0x10] sm:$0xff] %v1551
        %1584 = vst [vmem:[%s245 + $0x18] sm:$0xff] %v1552
        %1585 = vst [vmem:[%s245 + $0x20] sm:$0xff] %v1553
        %1586 = vst [vmem:[%s245 + $0x28] sm:$0xff] %v1554
        %1587 = vst [vmem:[%s245 + $0x30] sm:$0xff] %v1555
        %1588 = vst [vmem:[%s245 + $0x38] sm:$0xff] %v1556
        %1589 = vst [vmem:[%s245 + $0x40] sm:$0xff] %v1557
        %1590 = vst [vmem:[%s245 + $0x48] sm:$0xff] %v1558
        %1591 = vst [vmem:[%s245 + $0x50] sm:$0xff] %v1559
        %1592 = vst [vmem:[%s245 + $0x58] sm:$0xff] %v1560
        %1593 = vst [vmem:[%s245 + $0x60] sm:$0xff] %v1561
        %1594 = vst [vmem:[%s245 + $0x68] sm:$0xff] %v1562
        %1595 = vst [vmem:[%s245 + $0x70] sm:$0xff] %v1563
        %1596 = vst [vmem:[%s245 + $0x78] sm:$0xff] %v1564
        %1597 = vst [vmem:[%s245 + $0x80] sm:$0xff] %v1565
        %1598 = vst [vmem:[%s245 + $0x88] sm:$0xff] %v1566
        %1599 = vst [vmem:[%s245 + $0x90] sm:$0xff] %v1567
        %1600 = vst [vmem:[%s245 + $0x98] sm:$0xff] %v1568
        %1601 = vst [vmem:[%s245 + $0xa0] sm:$0xff] %v1569
        %1602 = vst [vmem:[%s245 + $0xa8] sm:$0xff] %v1570
        %1603 = vst [vmem:[%s245 + $0xb0] sm:$0xff] %v1571
        %1604 = vst [vmem:[%s245 + $0xb8] sm:$0xff] %v1572
        %1605 = vst [vmem:[%s245 + $0xc0] sm:$0xff] %v1573
        %1606 = vst [vmem:[%s245 + $0xc8] sm:$0xff] %v1574
        %1607 = vst [vmem:[%s245 + $0xd0] sm:$0xff] %v1575
        %1608 = vst [vmem:[%s245 + $0xd8] sm:$0xff] %v1576
        %1609 = vst [vmem:[%s245 + $0xe0] sm:$0xff] %v1577
        %1610 = vst [vmem:[%s245 + $0xe8] sm:$0xff] %v1578
        %1611 = vst [vmem:[%s245 + $0xf0] sm:$0xff] %v1579
        %1612 = vst [vmem:[%s245 + $0xf8] sm:$0xff] %v1580
        %s1613 = sand.u32 %s159, 1
        %s1614 = scalar_lea.sflag [#allocation3], %s1613
        %s1615 = sand.u32 %s159, 1
        %s1616 = smul.addr %s1615, 256
        %s1617 = scalar_lea.vmem [#allocation2], %s1616
        // Predicated region
        $region45: #{nan_handling_encoder.3} parent=43 // pred_check
          %p1618 = pneg %p169
        $region46: #{nan_handling_encoder.3} parent=43 // pred_check_branch
          %1620 = sbr.rel (%p1618) target = $region48
        $region47: #{nan_handling_encoder.3} parent=43 // pred_region
          %s1621 = smul.u32 32, %s20
          %s1623 = ssub.s32 4096, 4096
          %1624 = vsyncadd %s1614, %s1623
          %s1625 = smul.addr %s1621, 128
          %s1626 = scalar_lea.hbm %s6, %s1625
          %s1627 = sshll.u32 %s1617, 4
          %s1628 = int_to_ptr.vmem [resolvable:$true] %s1627
          %1633 = dma.vmem_to_hbm [thread:$0]  %s1628, 4096, %s1626, %s1614, 128, 128, 8
        $region48: #{nan_handling_encoder.3} parent=43 // pred_fallthru
          _
      $region44: #{nan_handling_encoder.3} parent=5 // pred_fallthru
        _
      %p1634 = scmp.le.s32.totalorder 2, %s15
      // Predicated region
      $region49: #{nan_handling_encoder.3} parent=5 // pred_check
        %p1635 = pneg %p1634
      $region50: #{nan_handling_encoder.3} parent=5 // pred_check_branch
        %1637 = sbr.rel (%p1635) target = $region52
      $region51: #{nan_handling_encoder.3} parent=5 // pred_region
        %s1638 = ssub.s32 %s15, 2
        // Predicated region
        $region53: #{nan_handling_encoder.3} parent=51 // pred_check
          %p1639 = pneg %p175
        $region54: #{nan_handling_encoder.3} parent=51 // pred_check_branch
          %1641 = sbr.rel (%p1639) target = $region56
        $region55: #{nan_handling_encoder.3} parent=51 // pred_region
          %s1642 = sand.u32 %s160, 1
          %s1643 = scalar_lea.sflag [#allocation3], %s1642
          %s1644 = sand.u32 %s160, 1
          %s1645 = smul.addr %s1644, 256
          %s1646 = scalar_lea.vmem [#allocation2], %s1645
          %1647 = dma.done %s1643, 4096
        $region56: #{nan_handling_encoder.3} parent=51 // pred_fallthru
          _
      $region52: #{nan_handling_encoder.3} parent=5 // pred_fallthru
        _
    $region6: #{nan_handling_encoder.3} parent=1 // loop_footer
      %s19 = sadd.s32 1, %s15
    $region7: #{nan_handling_encoder.3} parent=1 // loop_footer_branch
      %14 = sbr.rel target = $region3
    $region8: #{nan_handling_encoder.3} parent=1 // loop_exit
      _
    %1648 = vsyncpa [#allocation3], 1
    %s1649 = scalar_lea.sflag [#allocation3], 1
    %1650 = vsyncpa %s1649, 1

</llo_original>
